<compile_context>
chip_gen: v7x
topology: tpu7x:2x2x1
jax: 0.10.0
libtpu: 0.0.40
codegen_flags: <defaults>
</compile_context>

<pallas_src>
import functools

import jax
import jax.numpy as jnp
import numpy as np
from jax import random
from jax.experimental import pallas as pl
from jax.experimental.pallas import tpu as pltpu


# TODO(synk): bf16 activations/weights with f32 accumulation would ~double MXU/HBM throughput
# on v6e/v7x; kept f32 here so the numerics are exact vs the f32 reference and portable to v5e.
# TODO(synk): lane-dense outputs: pad cout (16/24) to a multiple of 128 in the reduce kernel
# store and slice in the wrapper to avoid masked vst.msk epilogues at production sizes.
# TODO(synk): for production-sized images, replace the whole-(small)-input-resident block in
# the fused dw kernel with a halo row-window (pl.Element on H or manual make_async_copy).


_vmem_limit_cache = [None]


def _vmem_limit_bytes():
    # Per-generation scoped-VMEM budget: 3/4 of physical (<=100 MiB), fallback 32 MiB.
    if _vmem_limit_cache[0] is None:
        try:
            cap = int(pltpu.get_tpu_info().vmem_capacity_bytes)
            _vmem_limit_cache[0] = max(32 * 1024 * 1024,
                                       min((cap * 3) // 4, 100 * 1024 * 1024))
        except Exception:
            _vmem_limit_cache[0] = 32 * 1024 * 1024
    return _vmem_limit_cache[0]


def _cparams(*sem):
    return pltpu.CompilerParams(dimension_semantics=sem,
                                vmem_limit_bytes=_vmem_limit_bytes())


def _pick_tile_m(m, target):
    """Largest M tile that divides m, is <= target and a multiple of 8 (else the full extent)."""
    if m <= target:
        return m
    t = (target // 8) * 8
    while t >= 8:
        if m % t == 0:
            return t
        t -= 8
    return m


def _pick_tile_rows(rows, target):
    if rows <= target:
        return rows
    for t in range(target, 0, -1):
        if rows % t == 0:
            return t
    return rows


# ------------------------------- Pallas kernels -------------------------------

def _dw_fused_kernel(*refs, has_expand, k, stride, th, wo, pad, h_in, w_in, inv_hw):
    """Expand 1x1 (optional) + SiLU + depthwise KxK (BN folded) + SiLU + SE pool/FCs.

    Computes one tile of `th` *output* rows; also accumulates the SE global-average-pool
    across row tiles and finalizes both excitation FCs at the last tile.
    """
    if has_expand:
        (x_ref, we_ref, be_ref, wd_ref, bd_ref,
         w1_ref, b1_ref, w2_ref, b2_ref, o_ref, e_ref, se_acc) = refs
    else:
        (x_ref, wd_ref, bd_ref,
         w1_ref, b1_ref, w2_ref, b2_ref, o_ref, e_ref, se_acc) = refs

    t = pl.program_id(1)
    rows_in = (th - 1) * stride + k            # padded-input rows needed for this tile
    wp = x_ref.shape[2]                        # padded width
    row0 = t * (th * stride)                   # first padded-input row of this tile

    # Dense (stride-1) load of the input row window for this tile.
    xt = x_ref[0, pl.ds(row0, rows_in), :, :]  # (rows_in, wp, cin)

    if has_expand:
        cexp = we_ref.shape[1]
        y = jnp.dot(xt.reshape(rows_in * wp, -1), we_ref[...],
                    preferred_element_type=jnp.float32) + be_ref[...]
        ex = (y * jax.nn.sigmoid(y)).reshape(rows_in, wp, cexp)
        # Zero-mask positions that are conv padding of the depthwise input (the expand conv
        # is only defined on valid pixels; its padded halo must be exactly zero).
        ri = jax.lax.broadcasted_iota(jnp.int32, (rows_in, wp, 1), 0) + row0
        ci = jax.lax.broadcasted_iota(jnp.int32, (rows_in, wp, 1), 1)
        valid = (ri >= pad) & (ri < pad + h_in) & (ci >= pad) & (ci < pad + w_in)
        ex = jnp.where(valid, ex, 0.0)
    else:
        ex = xt                                # zero-padded input is already correct

    cexp = ex.shape[-1]

    # Deinterleave the W axis once per tile (value-level, not Ref-level) so that every
    # per-tap slice below is contiguous -> no strided Ref loads at all.
    if stride > 1:
        cols = [ex[:, b::stride, :] for b in range(stride)]
    else:
        cols = [ex]

    wd = wd_ref[...]                           # (k*k, cexp)
    acc = jnp.zeros((th, wo, cexp), jnp.float32)
    for kh in range(k):
        row_hi = kh + (th - 1) * stride + 1
        for kw in range(k):
            src = cols[kw % stride]
            a = kw // stride
            tap = src[kh:row_hi:stride, a:a + wo, :]
            acc = acc + tap * wd[kh * k + kw, :]
    y = acc + bd_ref[...][0]
    dw = y * jax.nn.sigmoid(y)                 # SiLU
    o_ref[...] = dw[None]

    # Fused squeeze-and-excitation: pool partial sums across row tiles, FCs at the last tile.
    @pl.when(t == 0)
    def _():
        se_acc[...] = jnp.zeros_like(se_acc)

    se_acc[...] += jnp.sum(dw, axis=(0, 1))[None]          # (1, cexp)

    @pl.when(t == pl.num_programs(1) - 1)
    def _():
        s = se_acc[...] * inv_hw                            # global mean over H*W
        h1 = jnp.dot(s, w1_ref[...], preferred_element_type=jnp.float32) + b1_ref[...]
        h1 = h1 * jax.nn.sigmoid(h1)                        # SiLU
        g = jnp.dot(h1, w2_ref[...], preferred_element_type=jnp.float32) + b2_ref[...]
        e_ref[...] = jax.nn.sigmoid(g)[None]                # (1, 1, cexp)


def _pw_reduce_kernel(x_ref, e_ref, w_ref, b_ref, *rest, has_residual):
    # SE rescale prologue + 1x1 reduce conv (BN folded) + optional residual-add epilogue.
    if has_residual:
        res_ref, o_ref = rest
    else:
        (o_ref,) = rest
    xs = x_ref[0] * e_ref[0]                                   # (tm, cexp) * (1, cexp)
    y = jnp.dot(xs, w_ref[...], preferred_element_type=jnp.float32) + b_ref[...]
    if has_residual:
        y = y + res_ref[0]
    o_ref[...] = y[None]


# ------------------------------ Pallas wrappers ------------------------------

def expand_dw_se_fused(x, exp_p, dw_p, se_p, tile_rows):
    """x: (n, H, W, cin) NHWC (unpadded).  Returns (dw_out (n,ho,wo,cexp), excite (n,1,cexp))."""
    n, H, W, _ = x.shape
    k, stride, pad = dw_p["k"], dw_p["stride"], dw_p["pad"]
    cexp = dw_p["w"].shape[1]
    cr = se_p["w1"].shape[1]
    has_expand = exp_p is not None

    # Only the SMALL (cin-channel) input is padded; the expanded tensor never hits HBM here.
    xp = jnp.pad(x, ((0, 0), (pad, pad), (pad, pad), (0, 0)))
    hp, wpad = H + 2 * pad, W + 2 * pad
    cin = xp.shape[-1]
    ho = (hp - k) // stride + 1
    wo = (wpad - k) // stride + 1
    th = _pick_tile_rows(ho, tile_rows)

    in_specs = [pl.BlockSpec((1, hp, wpad, cin), lambda bi, t: (bi, 0, 0, 0))]
    args = [xp]
    if has_expand:
        in_specs += [pl.BlockSpec((cin, cexp), lambda bi, t: (0, 0)),
                     pl.BlockSpec((1, cexp), lambda bi, t: (0, 0))]
        args += [exp_p["w"], exp_p["b"]]
    in_specs += [pl.BlockSpec((k * k, cexp), lambda bi, t: (0, 0)),
                 pl.BlockSpec((1, cexp), lambda bi, t: (0, 0)),
                 pl.BlockSpec((cexp, cr), lambda bi, t: (0, 0)),
                 pl.BlockSpec((1, cr), lambda bi, t: (0, 0)),
                 pl.BlockSpec((cr, cexp), lambda bi, t: (0, 0)),
                 pl.BlockSpec((1, cexp), lambda bi, t: (0, 0))]
    args += [dw_p["w"], dw_p["b"], se_p["w1"], se_p["b1"], se_p["w2"], se_p["b2"]]

    flops = 2 * n * ho * wo * cexp * k * k + 2 * n * cexp * cr * 2
    if has_expand:
        flops += 2 * n * hp * wpad * cin * cexp
    trans = n * cexp * (hp * wpad + ho * wo)
    bytes_acc = 4 * (int(xp.size) + sum(int(a.size) for a in args[1:])
                     + n * ho * wo * cexp + n * cexp)

    return pl.pallas_call(
        functools.partial(_dw_fused_kernel, has_expand=has_expand, k=k, stride=stride,
                          th=th, wo=wo, pad=pad, h_in=H, w_in=W,
                          inv_hw=float(1.0 / (ho * wo))),
        out_shape=(jax.ShapeDtypeStruct((n, ho, wo, cexp), jnp.float32),
                   jax.ShapeDtypeStruct((n, 1, cexp), jnp.float32)),
        grid=(n, ho // th),
        in_specs=in_specs,
        out_specs=(pl.BlockSpec((1, th, wo, cexp), lambda bi, t: (bi, t, 0, 0)),
                   pl.BlockSpec((1, 1, cexp), lambda bi, t: (bi, 0, 0))),
        scratch_shapes=[pltpu.VMEM((1, cexp), jnp.float32)],
        compiler_params=_cparams("parallel", "arbitrary"),
        cost_estimate=pl.CostEstimate(flops=int(flops), transcendentals=int(trans),
                                      bytes_accessed=int(bytes_acc)),
    )(*args)


def pw_reduce_fused(x, e, w, b, res, tile_m):
    n, m, cexp = x.shape
    cout = w.shape[1]
    tm = _pick_tile_m(m, tile_m)
    in_specs = [
        pl.BlockSpec((1, tm, cexp), lambda bi, i: (bi, i, 0)),
        pl.BlockSpec((1, 1, cexp), lambda bi, i: (bi, 0, 0)),
        pl.BlockSpec((cexp, cout), lambda bi, i: (0, 0)),
        pl.BlockSpec((1, cout), lambda bi, i: (0, 0)),
    ]
    args = [x, e, w, b]
    if res is not None:
        in_specs.append(pl.BlockSpec((1, tm, cout), lambda bi, i: (bi, i, 0)))
        args.append(res)
    bytes_acc = 4 * (sum(int(a.size) for a in args) + n * m * cout)
    return pl.pallas_call(
        functools.partial(_pw_reduce_kernel, has_residual=res is not None),
        out_shape=jax.ShapeDtypeStruct((n, m, cout), jnp.float32),
        grid=(n, m // tm),
        in_specs=in_specs,
        out_specs=pl.BlockSpec((1, tm, cout), lambda bi, i: (bi, i, 0)),
        compiler_params=_cparams("parallel", "parallel"),
        cost_estimate=pl.CostEstimate(flops=int(2 * n * m * cexp * cout),
                                      transcendentals=0, bytes_accessed=int(bytes_acc)),
    )(*args)


# ------------------------------ MBConvN forward ------------------------------

def mbconv_forward(x_nchw, p, *, tile_m=512, tile_rows=8):
    """Inference-mode MBConvN forward (Pallas).  NCHW in, NCHW out."""
    x = jnp.transpose(x_nchw, (0, 2, 3, 1)).astype(jnp.float32)    # NHWC
    n, H, W, cin = x.shape
    res = x
    d = p["dw"]
    h, e = expand_dw_se_fused(x, p["expand"], d, p["se"], tile_rows)
    _, ho, wo, cexp = h.shape
    hflat = h.reshape(n, ho * wo, cexp)
    # TODO(synk): DropSample is a training-only stochastic op; identity in eval mode.
    res_flat = res.reshape(n, H * W, cin) if p["skip"] else None
    out = pw_reduce_fused(hflat, e, p["reduce"]["w"], p["reduce"]["b"], res_flat, tile_m)
    return jnp.transpose(out.reshape(n, ho, wo, -1), (0, 3, 1, 2))  # back to NCHW


# ----------------------------- pure-JAX reference -----------------------------

def mbconv_ref(x_nchw, p):
    hi = jax.lax.Precision.HIGHEST
    x = jnp.transpose(x_nchw, (0, 2, 3, 1)).astype(jnp.float32)
    res = x
    h = x
    if p["expand"] is not None:
        y = jnp.einsum("nhwc,cd->nhwd", h, p["expand"]["w"], precision=hi) + p["expand"]["b"][0]
        h = y * jax.nn.sigmoid(y)
    d = p["dw"]
    k, s, pad = d["k"], d["stride"], d["pad"]
    xp = jnp.pad(h, ((0, 0), (pad, pad), (pad, pad), (0, 0)))
    H, W, c = h.shape[1], h.shape[2], h.shape[3]
    ho = (H + 2 * pad - k) // s + 1
    wo = (W + 2 * pad - k) // s + 1
    acc = jnp.zeros((h.shape[0], ho, wo, c), jnp.float32)
    for kh in range(k):
        for kw in range(k):
            acc = acc + xp[:, kh:kh + (ho - 1) * s + 1:s,
                           kw:kw + (wo - 1) * s + 1:s, :] * d["w"][kh * k + kw]
    y = acc + d["b"][0]
    h = y * jax.nn.sigmoid(y)
    se = p["se"]
    sq = jnp.mean(h, axis=(1, 2))
    e1 = jnp.einsum("nc,cd->nd", sq, se["w1"], precision=hi) + se["b1"]
    e1 = e1 * jax.nn.sigmoid(e1)
    e2 = jax.nn.sigmoid(jnp.einsum("nd,dc->nc", e1, se["w2"], precision=hi) + se["b2"])
    h = h * e2[:, None, None, :]
    y = jnp.einsum("nhwc,cd->nhwd", h, p["reduce"]["w"], precision=hi) + p["reduce"]["b"][0]
    if p["skip"]:
        y = y + res
    return jnp.transpose(y, (0, 3, 1, 2))


# ----------------------------- parameter building -----------------------------

class KeyGen:
    def __init__(self, key):
        self.key = key

    def __call__(self):
        self.key, sub = random.split(self.key)
        return sub


def _fold_bn(kg, c, eps=1e-5):
    gamma = 1.0 + 0.1 * random.normal(kg(), (c,), jnp.float32)
    beta = 0.1 * random.normal(kg(), (c,), jnp.float32)
    running_mean = 0.1 * random.normal(kg(), (c,), jnp.float32)
    running_var = 1.0 + 0.1 * jnp.abs(random.normal(kg(), (c,), jnp.float32))
    scale = gamma / jnp.sqrt(running_var + eps)
    bias = beta - running_mean * scale
    return scale, bias


def init_pw(kg, cin, cout):
    w = random.normal(kg(), (cin, cout), jnp.float32) / np.sqrt(cin)
    scale, bias = _fold_bn(kg, cout)
    # BN scale folded into the weight matrix at build time (per-output-channel).
    return {"w": w * scale[None, :], "b": bias.reshape(1, cout)}


def init_dw(kg, c, k, stride):
    w = random.normal(kg(), (k * k, c), jnp.float32) / np.sqrt(k * k)
    scale, bias = _fold_bn(kg, c)
    return {"w": w * scale[None, :], "b": bias.reshape(1, c),
            "k": k, "stride": stride, "pad": (k - 1) // 2}


def init_se(kg, c, r):
    cr = max(1, c // r)
    w1 = random.normal(kg(), (c, cr), jnp.float32) / np.sqrt(c)
    b1 = 0.1 * random.normal(kg(), (1, cr), jnp.float32)
    w2 = random.normal(kg(), (cr, c), jnp.float32) / np.sqrt(cr)
    b2 = 0.1 * random.normal(kg(), (1, c), jnp.float32)
    return {"w1": w1, "b1": b1, "w2": w2, "b2": b2}


def init_mbconv(kg, n_in, n_out, expand_factor, kernel_size, stride, r):
    expanded = expand_factor * n_in
    return {
        "expand": None if expand_factor == 1 else init_pw(kg, n_in, expanded),
        "dw": init_dw(kg, expanded, kernel_size, stride),
        "se": init_se(kg, expanded, r),
        "reduce": init_pw(kg, expanded, n_out),
        "skip": (n_in == n_out) and (stride == 1),
    }


# ------------------------------------ main ------------------------------------

if __name__ == "__main__":
    kg = KeyGen(random.PRNGKey(0))

    # Block 1: stride-1 3x3 MBConv6 + skip -> fused SE-rescale prologue + residual epilogue.
    p1 = init_mbconv(kg, n_in=16, n_out=16, expand_factor=6, kernel_size=3, stride=1, r=24)
    # Block 2: stride-2 5x5 MBConv6 (no skip) -> deinterleaved strided depthwise path.
    p2 = init_mbconv(kg, n_in=16, n_out=24, expand_factor=6, kernel_size=5, stride=2, r=24)
    # Block 3: expand_factor=1 (Identity expand) + skip -> no-expand kernel path.
    p3 = init_mbconv(kg, n_in=24, n_out=24, expand_factor=1, kernel_size=3, stride=1, r=24)

    x = random.normal(kg(), (2, 16, 16, 16), jnp.float32)     # PyTorch-style NCHW input

    # Small tiles so multi-step row/M grids (and the SE accumulation across tiles) are
    # exercised at these toy spatial sizes; at production sizes use the larger defaults.
    y1 = mbconv_forward(x, p1, tile_m=128, tile_rows=4)
    y2 = mbconv_forward(y1, p2, tile_m=128, tile_rows=4)
    y3 = mbconv_forward(y2, p3, tile_m=128, tile_rows=4)
    jax.block_until_ready(y3)

    r1 = mbconv_ref(x, p1)
    r2 = mbconv_ref(r1, p2)
    r3 = mbconv_ref(r2, p3)

    assert y1.shape == (2, 16, 16, 16), y1.shape
    assert y2.shape == (2, 24, 8, 8), y2.shape
    assert y3.shape == (2, 24, 8, 8), y3.shape
    assert np.isfinite(np.asarray(y1)).all()
    assert np.isfinite(np.asarray(y2)).all()
    assert np.isfinite(np.asarray(y3)).all()
    err = max(float(jnp.max(jnp.abs(y1 - r1))),
              float(jnp.max(jnp.abs(y2 - r2))),
              float(jnp.max(jnp.abs(y3 - r3))))
    assert err < 5e-2, f"Pallas vs pure-JAX reference mismatch: {err}"
    print("KERNEL_OK")
</pallas_src>

<mosaic_0001>
module attributes {stable_mosaic.version = 11 : i64} {
  func.func @_dw_fused_kernel(%arg0: i32, %arg1: i32, %arg2: memref<1x18x18x16xf32, #tpu.memory_space<vmem>>, %arg3: memref<16x96xf32, #tpu.memory_space<vmem>>, %arg4: memref<1x96xf32, #tpu.memory_space<vmem>>, %arg5: memref<9x96xf32, #tpu.memory_space<vmem>>, %arg6: memref<1x96xf32, #tpu.memory_space<vmem>>, %arg7: memref<96x4xf32, #tpu.memory_space<vmem>>, %arg8: memref<1x4xf32, #tpu.memory_space<vmem>>, %arg9: memref<4x96xf32, #tpu.memory_space<vmem>>, %arg10: memref<1x96xf32, #tpu.memory_space<vmem>>, %arg11: memref<1x4x16x96xf32, #tpu.memory_space<vmem>>, %arg12: memref<1x1x96xf32, #tpu.memory_space<vmem>>, %arg13: memref<1x96xf32, #tpu.memory_space<vmem>>) attributes {dimension_semantics = [#tpu.dimension_semantics<parallel>, #tpu.dimension_semantics<arbitrary>], iteration_bounds = array<i64: 2, 4>, scalar_prefetch = 0 : i64, scratch_operands = 1 : i64, tpu.core_type = #tpu.core_type<tc>, window_params = [{transform_indices = @transform_0, window_bounds = array<i64: 1, 18, 18, 16>}, {pipeline_mode = #tpu.pipeline_mode<synchronous>, transform_indices = @transform_1, window_bounds = array<i64: 16, 96>}, {pipeline_mode = #tpu.pipeline_mode<synchronous>, transform_indices = @transform_2, window_bounds = array<i64: 1, 96>}, {pipeline_mode = #tpu.pipeline_mode<synchronous>, transform_indices = @transform_3, window_bounds = array<i64: 9, 96>}, {pipeline_mode = #tpu.pipeline_mode<synchronous>, transform_indices = @transform_4, window_bounds = array<i64: 1, 96>}, {pipeline_mode = #tpu.pipeline_mode<synchronous>, transform_indices = @transform_5, window_bounds = array<i64: 96, 4>}, {pipeline_mode = #tpu.pipeline_mode<synchronous>, transform_indices = @transform_6, window_bounds = array<i64: 1, 4>}, {pipeline_mode = #tpu.pipeline_mode<synchronous>, transform_indices = @transform_7, window_bounds = array<i64: 4, 96>}, {pipeline_mode = #tpu.pipeline_mode<synchronous>, transform_indices = @transform_8, window_bounds = array<i64: 1, 96>}, {transform_indices = @transform_9, window_bounds = array<i64: 1, 4, 16, 96>}, {transform_indices = @transform_10, window_bounds = array<i64: 1, 1, 96>}]} {
    %c4_i32 = arith.constant 4 : i32
    %0 = arith.muli %arg1, %c4_i32 : i32
    %c0 = arith.constant 0 : index
    %1 = arith.index_cast %0 : i32 to index
    %c0_0 = arith.constant 0 : index
    %c0_1 = arith.constant 0 : index
    %2 = vector.load %arg2[%c0, %1, %c0_0, %c0_1] : memref<1x18x18x16xf32, #tpu.memory_space<vmem>>, vector<1x6x18x16xf32>
    %3 = vector.shape_cast %2 : vector<1x6x18x16xf32> to vector<6x18x16xf32>
    %4 = vector.shape_cast %3 : vector<6x18x16xf32> to vector<108x16xf32>
    %c0_2 = arith.constant 0 : index
    %c0_3 = arith.constant 0 : index
    %5 = vector.load %arg3[%c0_2, %c0_3] : memref<16x96xf32, #tpu.memory_space<vmem>>, vector<16x96xf32>
    %cst = arith.constant dense<0.000000e+00> : vector<108x96xf32>
    %6 = tpu.matmul %4, %5, %cst {dimension_numbers = #tpu.dot_dimension_numbers<[1], [0], [0], [1], [0, 0, 1, 1], [], []>} : vector<108x16xf32>, vector<16x96xf32>, vector<108x96xf32> -> vector<108x96xf32>
    %c0_4 = arith.constant 0 : index
    %c0_5 = arith.constant 0 : index
    %7 = vector.load %arg4[%c0_4, %c0_5] : memref<1x96xf32, #tpu.memory_space<vmem>>, vector<1x96xf32>
    %8 = vector.broadcast %7 : vector<1x96xf32> to vector<108x96xf32>
    %9 = arith.addf %6, %8 : vector<108x96xf32>
    %10 = arith.negf %9 : vector<108x96xf32>
    %11 = math.exp %10 : vector<108x96xf32>
    %cst_6 = arith.constant 1.000000e+00 : f32
    %12 = vector.broadcast %cst_6 : f32 to vector<108x96xf32>
    %13 = arith.addf %12, %11 : vector<108x96xf32>
    %14 = arith.divf %12, %13 : vector<108x96xf32>
    %15 = arith.mulf %9, %14 : vector<108x96xf32>
    %16 = vector.shape_cast %15 : vector<108x96xf32> to vector<6x18x96xf32>
    %17 = tpu.iota {dimensions = array<i32: 0>} : vector<6x18x1xi32>
    %18 = vector.broadcast %0 : i32 to vector<6x18x1xi32>
    %19 = arith.addi %17, %18 : vector<6x18x1xi32>
    %20 = tpu.iota {dimensions = array<i32: 1>} : vector<6x18x1xi32>
    %c1_i32 = arith.constant 1 : i32
    %21 = vector.broadcast %c1_i32 : i32 to vector<6x18x1xi32>
    %22 = arith.cmpi sge, %19, %21 : vector<6x18x1xi32>
    %c17_i32 = arith.constant 17 : i32
    %23 = vector.broadcast %c17_i32 : i32 to vector<6x18x1xi32>
    %24 = arith.cmpi slt, %19, %23 : vector<6x18x1xi32>
    %25 = arith.andi %22, %24 : vector<6x18x1xi1>
    %c1_i32_7 = arith.constant 1 : i32
    %26 = vector.broadcast %c1_i32_7 : i32 to vector<6x18x1xi32>
    %27 = arith.cmpi sge, %20, %26 : vector<6x18x1xi32>
    %28 = arith.andi %25, %27 : vector<6x18x1xi1>
    %c17_i32_8 = arith.constant 17 : i32
    %29 = vector.broadcast %c17_i32_8 : i32 to vector<6x18x1xi32>
    %30 = arith.cmpi slt, %20, %29 : vector<6x18x1xi32>
    %31 = arith.andi %28, %30 : vector<6x18x1xi1>
    %cst_9 = arith.constant 0.000000e+00 : f32
    %32 = vector.shape_cast %31 : vector<6x18x1xi1> to vector<6x18x1xi1>
    %33 = vector.broadcast %32 : vector<6x18x1xi1> to vector<6x18x96xi1>
    %34 = vector.broadcast %cst_9 : f32 to vector<6x18x96xf32>
    %35 = arith.select %33, %16, %34 : vector<6x18x96xi1>, vector<6x18x96xf32>
    %c0_10 = arith.constant 0 : index
    %c0_11 = arith.constant 0 : index
    %36 = vector.load %arg5[%c0_10, %c0_11] : memref<9x96xf32, #tpu.memory_space<vmem>>, vector<9x96xf32>
    %cst_12 = arith.constant 0.000000e+00 : f32
    %37 = vector.broadcast %cst_12 : f32 to vector<4x16x96xf32>
    %38 = vector.extract_strided_slice %35 {offsets = [0, 0, 0], sizes = [4, 16, 96], strides = [1, 1, 1]} : vector<6x18x96xf32> to vector<4x16x96xf32>
    %39 = vector.extract_strided_slice %36 {offsets = [0, 0], sizes = [1, 96], strides = [1, 1]} : vector<9x96xf32> to vector<1x96xf32>
    %40 = vector.shape_cast %39 : vector<1x96xf32> to vector<96xf32>
    %41 = vector.shape_cast %40 : vector<96xf32> to vector<1x1x96xf32>
    %42 = vector.broadcast %41 : vector<1x1x96xf32> to vector<4x16x96xf32>
    %43 = arith.mulf %38, %42 : vector<4x16x96xf32>
    %44 = arith.addf %37, %43 : vector<4x16x96xf32>
    %45 = vector.extract_strided_slice %35 {offsets = [0, 1, 0], sizes = [4, 16, 96], strides = [1, 1, 1]} : vector<6x18x96xf32> to vector<4x16x96xf32>
    %46 = vector.extract_strided_slice %36 {offsets = [1, 0], sizes = [1, 96], strides = [1, 1]} : vector<9x96xf32> to vector<1x96xf32>
    %47 = vector.shape_cast %46 : vector<1x96xf32> to vector<96xf32>
    %48 = vector.shape_cast %47 : vector<96xf32> to vector<1x1x96xf32>
    %49 = vector.broadcast %48 : vector<1x1x96xf32> to vector<4x16x96xf32>
    %50 = arith.mulf %45, %49 : vector<4x16x96xf32>
    %51 = arith.addf %44, %50 : vector<4x16x96xf32>
    %52 = vector.extract_strided_slice %35 {offsets = [0, 2, 0], sizes = [4, 16, 96], strides = [1, 1, 1]} : vector<6x18x96xf32> to vector<4x16x96xf32>
    %53 = vector.extract_strided_slice %36 {offsets = [2, 0], sizes = [1, 96], strides = [1, 1]} : vector<9x96xf32> to vector<1x96xf32>
    %54 = vector.shape_cast %53 : vector<1x96xf32> to vector<96xf32>
    %55 = vector.shape_cast %54 : vector<96xf32> to vector<1x1x96xf32>
    %56 = vector.broadcast %55 : vector<1x1x96xf32> to vector<4x16x96xf32>
    %57 = arith.mulf %52, %56 : vector<4x16x96xf32>
    %58 = arith.addf %51, %57 : vector<4x16x96xf32>
    %59 = vector.extract_strided_slice %35 {offsets = [1, 0, 0], sizes = [4, 16, 96], strides = [1, 1, 1]} : vector<6x18x96xf32> to vector<4x16x96xf32>
    %60 = vector.extract_strided_slice %36 {offsets = [3, 0], sizes = [1, 96], strides = [1, 1]} : vector<9x96xf32> to vector<1x96xf32>
    %61 = vector.shape_cast %60 : vector<1x96xf32> to vector<96xf32>
    %62 = vector.shape_cast %61 : vector<96xf32> to vector<1x1x96xf32>
    %63 = vector.broadcast %62 : vector<1x1x96xf32> to vector<4x16x96xf32>
    %64 = arith.mulf %59, %63 : vector<4x16x96xf32>
    %65 = arith.addf %58, %64 : vector<4x16x96xf32>
    %66 = vector.extract_strided_slice %35 {offsets = [1, 1, 0], sizes = [4, 16, 96], strides = [1, 1, 1]} : vector<6x18x96xf32> to vector<4x16x96xf32>
    %67 = vector.extract_strided_slice %36 {offsets = [4, 0], sizes = [1, 96], strides = [1, 1]} : vector<9x96xf32> to vector<1x96xf32>
    %68 = vector.shape_cast %67 : vector<1x96xf32> to vector<96xf32>
    %69 = vector.shape_cast %68 : vector<96xf32> to vector<1x1x96xf32>
    %70 = vector.broadcast %69 : vector<1x1x96xf32> to vector<4x16x96xf32>
    %71 = arith.mulf %66, %70 : vector<4x16x96xf32>
    %72 = arith.addf %65, %71 : vector<4x16x96xf32>
    %73 = vector.extract_strided_slice %35 {offsets = [1, 2, 0], sizes = [4, 16, 96], strides = [1, 1, 1]} : vector<6x18x96xf32> to vector<4x16x96xf32>
    %74 = vector.extract_strided_slice %36 {offsets = [5, 0], sizes = [1, 96], strides = [1, 1]} : vector<9x96xf32> to vector<1x96xf32>
    %75 = vector.shape_cast %74 : vector<1x96xf32> to vector<96xf32>
    %76 = vector.shape_cast %75 : vector<96xf32> to vector<1x1x96xf32>
    %77 = vector.broadcast %76 : vector<1x1x96xf32> to vector<4x16x96xf32>
    %78 = arith.mulf %73, %77 : vector<4x16x96xf32>
    %79 = arith.addf %72, %78 : vector<4x16x96xf32>
    %80 = vector.extract_strided_slice %35 {offsets = [2, 0, 0], sizes = [4, 16, 96], strides = [1, 1, 1]} : vector<6x18x96xf32> to vector<4x16x96xf32>
    %81 = vector.extract_strided_slice %36 {offsets = [6, 0], sizes = [1, 96], strides = [1, 1]} : vector<9x96xf32> to vector<1x96xf32>
    %82 = vector.shape_cast %81 : vector<1x96xf32> to vector<96xf32>
    %83 = vector.shape_cast %82 : vector<96xf32> to vector<1x1x96xf32>
    %84 = vector.broadcast %83 : vector<1x1x96xf32> to vector<4x16x96xf32>
    %85 = arith.mulf %80, %84 : vector<4x16x96xf32>
    %86 = arith.addf %79, %85 : vector<4x16x96xf32>
    %87 = vector.extract_strided_slice %35 {offsets = [2, 1, 0], sizes = [4, 16, 96], strides = [1, 1, 1]} : vector<6x18x96xf32> to vector<4x16x96xf32>
    %88 = vector.extract_strided_slice %36 {offsets = [7, 0], sizes = [1, 96], strides = [1, 1]} : vector<9x96xf32> to vector<1x96xf32>
    %89 = vector.shape_cast %88 : vector<1x96xf32> to vector<96xf32>
    %90 = vector.shape_cast %89 : vector<96xf32> to vector<1x1x96xf32>
    %91 = vector.broadcast %90 : vector<1x1x96xf32> to vector<4x16x96xf32>
    %92 = arith.mulf %87, %91 : vector<4x16x96xf32>
    %93 = arith.addf %86, %92 : vector<4x16x96xf32>
    %94 = vector.extract_strided_slice %35 {offsets = [2, 2, 0], sizes = [4, 16, 96], strides = [1, 1, 1]} : vector<6x18x96xf32> to vector<4x16x96xf32>
    %95 = vector.extract_strided_slice %36 {offsets = [8, 0], sizes = [1, 96], strides = [1, 1]} : vector<9x96xf32> to vector<1x96xf32>
    %96 = vector.shape_cast %95 : vector<1x96xf32> to vector<96xf32>
    %97 = vector.shape_cast %96 : vector<96xf32> to vector<1x1x96xf32>
    %98 = vector.broadcast %97 : vector<1x1x96xf32> to vector<4x16x96xf32>
    %99 = arith.mulf %94, %98 : vector<4x16x96xf32>
    %100 = arith.addf %93, %99 : vector<4x16x96xf32>
    %c0_13 = arith.constant 0 : index
    %c0_14 = arith.constant 0 : index
    %101 = vector.load %arg6[%c0_13, %c0_14] : memref<1x96xf32, #tpu.memory_space<vmem>>, vector<1x96xf32>
    %102 = vector.shape_cast %101 : vector<1x96xf32> to vector<96xf32>
    %103 = vector.shape_cast %102 : vector<96xf32> to vector<1x1x96xf32>
    %104 = vector.broadcast %103 : vector<1x1x96xf32> to vector<4x16x96xf32>
    %105 = arith.addf %100, %104 : vector<4x16x96xf32>
    %106 = arith.negf %105 : vector<4x16x96xf32>
    %107 = math.exp %106 : vector<4x16x96xf32>
    %cst_15 = arith.constant 1.000000e+00 : f32
    %108 = vector.broadcast %cst_15 : f32 to vector<4x16x96xf32>
    %109 = arith.addf %108, %107 : vector<4x16x96xf32>
    %110 = arith.divf %108, %109 : vector<4x16x96xf32>
    %111 = arith.mulf %105, %110 : vector<4x16x96xf32>
    %112 = vector.shape_cast %111 : vector<4x16x96xf32> to vector<1x4x16x96xf32>
    %c0_16 = arith.constant 0 : index
    %c0_17 = arith.constant 0 : index
    %c0_18 = arith.constant 0 : index
    %c0_19 = arith.constant 0 : index
    %113 = vector.load %arg11[%c0_16, %c0_17, %c0_18, %c0_19] : memref<1x4x16x96xf32, #tpu.memory_space<vmem>>, vector<1x4x16x96xf32>
    tpu.vector_store %arg11[%c0_16, %c0_17, %c0_18, %c0_19], %112 {strides = array<i32>} : memref<1x4x16x96xf32, #tpu.memory_space<vmem>>, vector<1x4x16x96xf32>,
    %c0_i32 = arith.constant 0 : i32
    %114 = arith.cmpi eq, %arg1, %c0_i32 : i32
    %115 = arith.extui %114 : i1 to i32
    %c0_i32_20 = arith.constant 0 : i32
    %116 = arith.cmpi ne, %115, %c0_i32_20 : i32
    scf.if %116 {
      %cst_27 = arith.constant 0.000000e+00 : f32
      %125 = vector.broadcast %cst_27 : f32 to vector<1x96xf32>
      %c0_28 = arith.constant 0 : index
      %c0_29 = arith.constant 0 : index
      %126 = vector.load %arg13[%c0_28, %c0_29] : memref<1x96xf32, #tpu.memory_space<vmem>>, vector<1x96xf32>
      tpu.vector_store %arg13[%c0_28, %c0_29], %125 {strides = array<i32>} : memref<1x96xf32, #tpu.memory_space<vmem>>, vector<1x96xf32>,
    } else {
    }
    %c0_21 = arith.constant 0 : index
    %c0_22 = arith.constant 0 : index
    %117 = vector.load %arg13[%c0_21, %c0_22] : memref<1x96xf32, #tpu.memory_space<vmem>>, vector<1x96xf32>
    %cst_23 = arith.constant dense<0.000000e+00> : vector<96xf32>
    %118 = vector.multi_reduction <add>, %111, %cst_23 [0, 1] : vector<4x16x96xf32> to vector<96xf32>
    %119 = vector.shape_cast %118 : vector<96xf32> to vector<1x96xf32>
    %120 = arith.addf %117, %119 : vector<1x96xf32>
    %c0_24 = arith.constant 0 : index
    %c0_25 = arith.constant 0 : index
    %121 = vector.load %arg13[%c0_24, %c0_25] : memref<1x96xf32, #tpu.memory_space<vmem>>, vector<1x96xf32>
    tpu.vector_store %arg13[%c0_24, %c0_25], %120 {strides = array<i32>} : memref<1x96xf32, #tpu.memory_space<vmem>>, vector<1x96xf32>,
    %c3_i32 = arith.constant 3 : i32
    %122 = arith.cmpi eq, %arg1, %c3_i32 : i32
    %123 = arith.extui %122 : i1 to i32
    %c0_i32_26 = arith.constant 0 : i32
    %124 = arith.cmpi ne, %123, %c0_i32_26 : i32
    scf.if %124 {
      %c0_27 = arith.constant 0 : index
      %c0_28 = arith.constant 0 : index
      %125 = vector.load %arg13[%c0_27, %c0_28] : memref<1x96xf32, #tpu.memory_space<vmem>>, vector<1x96xf32>
      %cst_29 = arith.constant 3.906250e-03 : f32
      %126 = vector.broadcast %cst_29 : f32 to vector<1x96xf32>
      %127 = arith.mulf %125, %126 : vector<1x96xf32>
      %c0_30 = arith.constant 0 : index
      %c0_31 = arith.constant 0 : index
      %128 = vector.load %arg7[%c0_30, %c0_31] : memref<96x4xf32, #tpu.memory_space<vmem>>, vector<96x4xf32>
      %cst_32 = arith.constant dense<0.000000e+00> : vector<1x4xf32>
      %129 = tpu.matmul %127, %128, %cst_32 {dimension_numbers = #tpu.dot_dimension_numbers<[1], [0], [0], [1], [0, 0, 1, 1], [], []>} : vector<1x96xf32>, vector<96x4xf32>, vector<1x4xf32> -> vector<1x4xf32>
      %c0_33 = arith.constant 0 : index
      %c0_34 = arith.constant 0 : index
      %130 = vector.load %arg8[%c0_33, %c0_34] : memref<1x4xf32, #tpu.memory_space<vmem>>, vector<1x4xf32>
      %131 = arith.addf %129, %130 : vector<1x4xf32>
      %132 = arith.negf %131 : vector<1x4xf32>
      %133 = math.exp %132 : vector<1x4xf32>
      %cst_35 = arith.constant 1.000000e+00 : f32
      %134 = vector.broadcast %cst_35 : f32 to vector<1x4xf32>
      %135 = arith.addf %134, %133 : vector<1x4xf32>
      %136 = arith.divf %134, %135 : vector<1x4xf32>
      %137 = arith.mulf %131, %136 : vector<1x4xf32>
      %c0_36 = arith.constant 0 : index
      %c0_37 = arith.constant 0 : index
      %138 = vector.load %arg9[%c0_36, %c0_37] : memref<4x96xf32, #tpu.memory_space<vmem>>, vector<4x96xf32>
      %cst_38 = arith.constant dense<0.000000e+00> : vector<1x96xf32>
      %139 = tpu.matmul %137, %138, %cst_38 {dimension_numbers = #tpu.dot_dimension_numbers<[1], [0], [0], [1], [0, 0, 1, 1], [], []>} : vector<1x4xf32>, vector<4x96xf32>, vector<1x96xf32> -> vector<1x96xf32>
      %c0_39 = arith.constant 0 : index
      %c0_40 = arith.constant 0 : index
      %140 = vector.load %arg10[%c0_39, %c0_40] : memref<1x96xf32, #tpu.memory_space<vmem>>, vector<1x96xf32>
      %141 = arith.addf %139, %140 : vector<1x96xf32>
      %142 = arith.negf %141 : vector<1x96xf32>
      %143 = math.exp %142 : vector<1x96xf32>
      %cst_41 = arith.constant 1.000000e+00 : f32
      %144 = vector.broadcast %cst_41 : f32 to vector<1x96xf32>
      %145 = arith.addf %144, %143 : vector<1x96xf32>
      %146 = arith.divf %144, %145 : vector<1x96xf32>
      %147 = vector.shape_cast %146 : vector<1x96xf32> to vector<1x1x96xf32>
      %c0_42 = arith.constant 0 : index
      %c0_43 = arith.constant 0 : index
      %c0_44 = arith.constant 0 : index
      %148 = vector.load %arg12[%c0_42, %c0_43, %c0_44] : memref<1x1x96xf32, #tpu.memory_space<vmem>>, vector<1x1x96xf32>
      tpu.vector_store %arg12[%c0_42, %c0_43, %c0_44], %147 {strides = array<i32>} : memref<1x1x96xf32, #tpu.memory_space<vmem>>, vector<1x1x96xf32>,
    } else {
    }
    return
  }
  func.func @transform_0(%arg0: i32, %arg1: i32) -> (i32, i32, i32, i32) {
    %c0_i32 = arith.constant 0 : i32
    %c0_i32_0 = arith.constant 0 : i32
    %c0_i32_1 = arith.constant 0 : i32
    %c0_i32_2 = arith.constant 0 : i32
    return %arg0, %c0_i32, %c0_i32_0, %c0_i32_1 : i32, i32, i32, i32
  }
  func.func @transform_1(%arg0: i32, %arg1: i32) -> (i32, i32) {
    %c0_i32 = arith.constant 0 : i32
    %c0_i32_0 = arith.constant 0 : i32
    %c0_i32_1 = arith.constant 0 : i32
    return %c0_i32, %c0_i32_0 : i32, i32
  }
  func.func @transform_2(%arg0: i32, %arg1: i32) -> (i32, i32) {
    %c0_i32 = arith.constant 0 : i32
    %c0_i32_0 = arith.constant 0 : i32
    %c0_i32_1 = arith.constant 0 : i32
    return %c0_i32, %c0_i32_0 : i32, i32
  }
  func.func @transform_3(%arg0: i32, %arg1: i32) -> (i32, i32) {
    %c0_i32 = arith.constant 0 : i32
    %c0_i32_0 = arith.constant 0 : i32
    %c0_i32_1 = arith.constant 0 : i32
    return %c0_i32, %c0_i32_0 : i32, i32
  }
  func.func @transform_4(%arg0: i32, %arg1: i32) -> (i32, i32) {
    %c0_i32 = arith.constant 0 : i32
    %c0_i32_0 = arith.constant 0 : i32
    %c0_i32_1 = arith.constant 0 : i32
    return %c0_i32, %c0_i32_0 : i32, i32
  }
  func.func @transform_5(%arg0: i32, %arg1: i32) -> (i32, i32) {
    %c0_i32 = arith.constant 0 : i32
    %c0_i32_0 = arith.constant 0 : i32
    %c0_i32_1 = arith.constant 0 : i32
    return %c0_i32, %c0_i32_0 : i32, i32
  }
  func.func @transform_6(%arg0: i32, %arg1: i32) -> (i32, i32) {
    %c0_i32 = arith.constant 0 : i32
    %c0_i32_0 = arith.constant 0 : i32
    %c0_i32_1 = arith.constant 0 : i32
    return %c0_i32, %c0_i32_0 : i32, i32
  }
  func.func @transform_7(%arg0: i32, %arg1: i32) -> (i32, i32) {
    %c0_i32 = arith.constant 0 : i32
    %c0_i32_0 = arith.constant 0 : i32
    %c0_i32_1 = arith.constant 0 : i32
    return %c0_i32, %c0_i32_0 : i32, i32
  }
  func.func @transform_8(%arg0: i32, %arg1: i32) -> (i32, i32) {
    %c0_i32 = arith.constant 0 : i32
    %c0_i32_0 = arith.constant 0 : i32
    %c0_i32_1 = arith.constant 0 : i32
    return %c0_i32, %c0_i32_0 : i32, i32
  }
  func.func @transform_9(%arg0: i32, %arg1: i32) -> (i32, i32, i32, i32) {
    %c0_i32 = arith.constant 0 : i32
    %c0_i32_0 = arith.constant 0 : i32
    %c0_i32_1 = arith.constant 0 : i32
    return %arg0, %arg1, %c0_i32, %c0_i32_0 : i32, i32, i32, i32
  }
  func.func @transform_10(%arg0: i32, %arg1: i32) -> (i32, i32, i32) {
    %c0_i32 = arith.constant 0 : i32
    %c0_i32_0 = arith.constant 0 : i32
    %c0_i32_1 = arith.constant 0 : i32
    return %arg0, %c0_i32, %c0_i32_0 : i32, i32, i32
  }
}

</mosaic_0001>

<llo_original>
// kernel: tpu_custom_call.1
$region0: #{tpu_custom_call.1}
  #allocation0 [shape = 'u32[]', space=smem, size = 0x4, offset = 0x4, fixed_abs, tag = 'smem constant byte address 0x4 - core index']
  #allocation1 [shape = 'u32[144,128]{1,0:T(1,128)}', space=vmem, size = 0x12000, scoped, tag = 'internal scratch']
  #allocation2 [shape = 'f32[1,96]{1,0:T(1,128)}', space=vmem, size = 0x200, scoped, tag = 'scratch operand']
  %s0 = inlined_call_operand.vmem [shape: f32[2,18,18,16], index: 0, kind: input, shape index: {}]
  %s1 = inlined_call_operand.vmem [shape: f32[16,96], index: 1, kind: input, shape index: {}]
  %s2 = inlined_call_operand.vmem [shape: f32[1,96], index: 2, kind: input, shape index: {}]
  %s3 = inlined_call_operand.vmem [shape: f32[9,96], index: 3, kind: input, shape index: {}]
  %s4 = inlined_call_operand.vmem [shape: f32[1,96], index: 4, kind: input, shape index: {}]
  %s5 = inlined_call_operand.vmem [shape: f32[96,4], index: 5, kind: input, shape index: {}]
  %s6 = inlined_call_operand.vmem [shape: f32[1,4], index: 6, kind: input, shape index: {}]
  %s7 = inlined_call_operand.vmem [shape: f32[4,96], index: 7, kind: input, shape index: {}]
  %s8 = inlined_call_operand.vmem [shape: f32[1,96], index: 8, kind: input, shape index: {}]
  %s9 = inlined_call_operand.hbm [shape: f32[2,16,16,96], index: 9, kind: output, shape index: {0}]
  %s10 = inlined_call_operand.hbm [shape: f32[2,1,96], index: 10, kind: output, shape index: {1}]
  %11 = xla_tuple %s9, %s10
  %s12 = sld [smem:[#allocation0]]
  $region85: #{tpu_custom_call.1} parent=0
    _
  %s14 = ssub.s32 1, %s12
  %s15 = scalar_select 0, %s14, %s12
  $region1: #{tpu_custom_call.1} parent=0
    #allocation3 [shape = 'u8[65536]{0}', space=vmem, size = 0x10000, scoped, tag = 'output window, operand 0']
    #allocation4 [shape = 's32[2]{0}', space=sflag, size = 0x8, scoped, tag = 'scoped memory for tpu_custom_call.1']
    #allocation5 [shape = 'u8[1024]{0}', space=vmem, size = 0x400, scoped, tag = 'output window, operand 1']
    #allocation6 [shape = 's32[2]{0}', space=sflag, size = 0x8, scoped, tag = 'scoped memory for tpu_custom_call.1']
    %16 = vsyncpa [#allocation4], 0
    %s17 = scalar_lea.sflag [#allocation4], 1
    %18 = vsyncpa %s17, 0
    %19 = vsyncpa [#allocation6], 0
    %s20 = scalar_lea.sflag [#allocation6], 1
    %21 = vsyncpa %s20, 0
    loop: start=0, step=1, limit=10
    $region2: #{tpu_custom_call.1} parent=1 // loop_pre_header
      _
    $region3: #{tpu_custom_call.1} parent=1 // loop_header
      %s23 = sphi 0, %s27
      %p24 = scmp.ge.s32.totalorder %s23, 10
      %s30 = sphi 0, %s42
      %s31 = sphi 0, %s38
      %s32 = sphi 0, %s30
      %s33 = sphi 0, %s31
      %s34 = sphi 0, %s32
      %s35 = sphi 0, %s33
      %s45 = sphi 0, %s47
      %s48 = sphi 0, %s45
      %s49 = sphi 0, %s48
      %s65 = sphi 0, %s49
      %s69 = sphi 0, %s69
      %s71 = sphi 0, %s69
      %s72 = sphi 0, %s71
      %s86 = sphi 0, %s72
      %s90 = sphi 0, %s90
      %s92 = sphi 0, %s90
      %s93 = sphi 0, %s92
      %s107 = sphi 0, %s93
      %s111 = sphi 0, %s111
      %s113 = sphi 0, %s111
      %s114 = sphi 0, %s113
      %s128 = sphi 0, %s114
      %s132 = sphi 0, %s132
      %s134 = sphi 0, %s132
      %s135 = sphi 0, %s134
      %s149 = sphi 0, %s135
      %s153 = sphi 0, %s153
      %s155 = sphi 0, %s153
      %s156 = sphi 0, %s155
      %s170 = sphi 0, %s156
      %s174 = sphi 0, %s174
      %s176 = sphi 0, %s174
      %s177 = sphi 0, %s176
      %s191 = sphi 0, %s177
      %s195 = sphi 0, %s195
      %s197 = sphi 0, %s195
      %s198 = sphi 0, %s197
      %s212 = sphi 0, %s198
      %s216 = sphi 0, %s216
      %s218 = sphi 0, %s216
      %s219 = sphi 0, %s218
      %s233 = sphi 0, %s219
      %s241 = sphi 0, %s243
      %s244 = sphi 0, %s241
      %s245 = sphi 0, %s244
      %s261 = sphi 0, %s245
      %s267 = sphi 0, %s269
      %s270 = sphi 0, %s267
      %s271 = sphi 0, %s270
      %s287 = sphi 0, %s271
    $region4: #{tpu_custom_call.1} parent=1 // loop_header_branch
      %26 = sbr.rel (%p24) target = $region8
    $region5: #{tpu_custom_call.1} parent=1 // loop_body
      %s28 = ssub.s32 %s23, 1
      %s29 = ssub.s32 %s23, 2
      %s36 = sadd.s32 1, %s31
      %p37 = scmp.ge.s32.totalorder %s36, 4
      %s38 = scalar_select %p37, 0, %s36
      %s39 = sadd.s32 1, %s30
      %s40 = scalar_select %p37, %s39, %s30
      %p41 = scmp.ge.s32.totalorder %s40, 2
      %s42 = scalar_select %p41, 0, %s40
      %s43 = ssub.s32 %s30, %s42
      %p44 = scmp.eq.s32.totalorder %s43, 0
      %s46 = sadd.s32 %s45, 1
      %s47 = scalar_select %p44, %s45, %s46
      %p50 = pneg %p44
      %p51 = scmp.eq.s32.totalorder %s23, 7
      %p52 = por %p50, %p51
      %p53 = scmp.ne.s32.totalorder %s45, %s48
      %p54 = scmp.eq.s32.totalorder %s23, 0
      %p55 = por %p53, %p54
      %p56 = scmp.ne.s32.totalorder %s45, %s48
      %p57 = scmp.eq.s32.totalorder %s28, 7
      %p58 = por %p56, %p57
      %p59 = scmp.ne.s32.totalorder %s48, %s49
      %p60 = scmp.eq.s32.totalorder %s28, 0
      %p61 = por %p59, %p60
      %p62 = scmp.ne.s32.totalorder %s48, %s49
      %p63 = scmp.eq.s32.totalorder %s29, 7
      %p64 = por %p62, %p63
      %p66 = scmp.ne.s32.totalorder %s49, %s65
      %p67 = scmp.eq.s32.totalorder %s29, 0
      %p68 = por %p66, %p67
      %s70 = sadd.s32 %s69, 1
      %p73 = scmp.eq.s32.totalorder %s23, 7
      %p74 = scmp.ne.s32.totalorder %s69, %s71
      %p75 = scmp.eq.s32.totalorder %s23, 0
      %p76 = por %p74, %p75
      %p77 = scmp.ne.s32.totalorder %s69, %s71
      %p78 = scmp.eq.s32.totalorder %s28, 7
      %p79 = por %p77, %p78
      %p80 = scmp.ne.s32.totalorder %s71, %s72
      %p81 = scmp.eq.s32.totalorder %s28, 0
      %p82 = por %p80, %p81
      %p83 = scmp.ne.s32.totalorder %s71, %s72
      %p84 = scmp.eq.s32.totalorder %s29, 7
      %p85 = por %p83, %p84
      %p87 = scmp.ne.s32.totalorder %s72, %s86
      %p88 = scmp.eq.s32.totalorder %s29, 0
      %p89 = por %p87, %p88
      %s91 = sadd.s32 %s90, 1
      %p94 = scmp.eq.s32.totalorder %s23, 7
      %p95 = scmp.ne.s32.totalorder %s90, %s92
      %p96 = scmp.eq.s32.totalorder %s23, 0
      %p97 = por %p95, %p96
      %p98 = scmp.ne.s32.totalorder %s90, %s92
      %p99 = scmp.eq.s32.totalorder %s28, 7
      %p100 = por %p98, %p99
      %p101 = scmp.ne.s32.totalorder %s92, %s93
      %p102 = scmp.eq.s32.totalorder %s28, 0
      %p103 = por %p101, %p102
      %p104 = scmp.ne.s32.totalorder %s92, %s93
      %p105 = scmp.eq.s32.totalorder %s29, 7
      %p106 = por %p104, %p105
      %p108 = scmp.ne.s32.totalorder %s93, %s107
      %p109 = scmp.eq.s32.totalorder %s29, 0
      %p110 = por %p108, %p109
      %s112 = sadd.s32 %s111, 1
      %p115 = scmp.eq.s32.totalorder %s23, 7
      %p116 = scmp.ne.s32.totalorder %s111, %s113
      %p117 = scmp.eq.s32.totalorder %s23, 0
      %p118 = por %p116, %p117
      %p119 = scmp.ne.s32.totalorder %s111, %s113
      %p120 = scmp.eq.s32.totalorder %s28, 7
      %p121 = por %p119, %p120
      %p122 = scmp.ne.s32.totalorder %s113, %s114
      %p123 = scmp.eq.s32.totalorder %s28, 0
      %p124 = por %p122, %p123
      %p125 = scmp.ne.s32.totalorder %s113, %s114
      %p126 = scmp.eq.s32.totalorder %s29, 7
      %p127 = por %p125, %p126
      %p129 = scmp.ne.s32.totalorder %s114, %s128
      %p130 = scmp.eq.s32.totalorder %s29, 0
      %p131 = por %p129, %p130
      %s133 = sadd.s32 %s132, 1
      %p136 = scmp.eq.s32.totalorder %s23, 7
      %p137 = scmp.ne.s32.totalorder %s132, %s134
      %p138 = scmp.eq.s32.totalorder %s23, 0
      %p139 = por %p137, %p138
      %p140 = scmp.ne.s32.totalorder %s132, %s134
      %p141 = scmp.eq.s32.totalorder %s28, 7
      %p142 = por %p140, %p141
      %p143 = scmp.ne.s32.totalorder %s134, %s135
      %p144 = scmp.eq.s32.totalorder %s28, 0
      %p145 = por %p143, %p144
      %p146 = scmp.ne.s32.totalorder %s134, %s135
      %p147 = scmp.eq.s32.totalorder %s29, 7
      %p148 = por %p146, %p147
      %p150 = scmp.ne.s32.totalorder %s135, %s149
      %p151 = scmp.eq.s32.totalorder %s29, 0
      %p152 = por %p150, %p151
      %s154 = sadd.s32 %s153, 1
      %p157 = scmp.eq.s32.totalorder %s23, 7
      %p158 = scmp.ne.s32.totalorder %s153, %s155
      %p159 = scmp.eq.s32.totalorder %s23, 0
      %p160 = por %p158, %p159
      %p161 = scmp.ne.s32.totalorder %s153, %s155
      %p162 = scmp.eq.s32.totalorder %s28, 7
      %p163 = por %p161, %p162
      %p164 = scmp.ne.s32.totalorder %s155, %s156
      %p165 = scmp.eq.s32.totalorder %s28, 0
      %p166 = por %p164, %p165
      %p167 = scmp.ne.s32.totalorder %s155, %s156
      %p168 = scmp.eq.s32.totalorder %s29, 7
      %p169 = por %p167, %p168
      %p171 = scmp.ne.s32.totalorder %s156, %s170
      %p172 = scmp.eq.s32.totalorder %s29, 0
      %p173 = por %p171, %p172
      %s175 = sadd.s32 %s174, 1
      %p178 = scmp.eq.s32.totalorder %s23, 7
      %p179 = scmp.ne.s32.totalorder %s174, %s176
      %p180 = scmp.eq.s32.totalorder %s23, 0
      %p181 = por %p179, %p180
      %p182 = scmp.ne.s32.totalorder %s174, %s176
      %p183 = scmp.eq.s32.totalorder %s28, 7
      %p184 = por %p182, %p183
      %p185 = scmp.ne.s32.totalorder %s176, %s177
      %p186 = scmp.eq.s32.totalorder %s28, 0
      %p187 = por %p185, %p186
      %p188 = scmp.ne.s32.totalorder %s176, %s177
      %p189 = scmp.eq.s32.totalorder %s29, 7
      %p190 = por %p188, %p189
      %p192 = scmp.ne.s32.totalorder %s177, %s191
      %p193 = scmp.eq.s32.totalorder %s29, 0
      %p194 = por %p192, %p193
      %s196 = sadd.s32 %s195, 1
      %p199 = scmp.eq.s32.totalorder %s23, 7
      %p200 = scmp.ne.s32.totalorder %s195, %s197
      %p201 = scmp.eq.s32.totalorder %s23, 0
      %p202 = por %p200, %p201
      %p203 = scmp.ne.s32.totalorder %s195, %s197
      %p204 = scmp.eq.s32.totalorder %s28, 7
      %p205 = por %p203, %p204
      %p206 = scmp.ne.s32.totalorder %s197, %s198
      %p207 = scmp.eq.s32.totalorder %s28, 0
      %p208 = por %p206, %p207
      %p209 = scmp.ne.s32.totalorder %s197, %s198
      %p210 = scmp.eq.s32.totalorder %s29, 7
      %p211 = por %p209, %p210
      %p213 = scmp.ne.s32.totalorder %s198, %s212
      %p214 = scmp.eq.s32.totalorder %s29, 0
      %p215 = por %p213, %p214
      %s217 = sadd.s32 %s216, 1
      %p220 = scmp.eq.s32.totalorder %s23, 7
      %p221 = scmp.ne.s32.totalorder %s216, %s218
      %p222 = scmp.eq.s32.totalorder %s23, 0
      %p223 = por %p221, %p222
      %p224 = scmp.ne.s32.totalorder %s216, %s218
      %p225 = scmp.eq.s32.totalorder %s28, 7
      %p226 = por %p224, %p225
      %p227 = scmp.ne.s32.totalorder %s218, %s219
      %p228 = scmp.eq.s32.totalorder %s28, 0
      %p229 = por %p227, %p228
      %p230 = scmp.ne.s32.totalorder %s218, %s219
      %p231 = scmp.eq.s32.totalorder %s29, 7
      %p232 = por %p230, %p231
      %p234 = scmp.ne.s32.totalorder %s219, %s233
      %p235 = scmp.eq.s32.totalorder %s29, 0
      %p236 = por %p234, %p235
      %s237 = ssub.s32 %s30, %s42
      %s238 = ssub.s32 %s31, %s38
      %s239 = sor.u32 %s237, %s238
      %p240 = scmp.eq.s32.totalorder %s239, 0
      %s242 = sadd.s32 %s241, 1
      %s243 = scalar_select %p240, %s241, %s242
      %p246 = pneg %p240
      %p247 = scmp.eq.s32.totalorder %s23, 7
      %p248 = por %p246, %p247
      %p249 = scmp.ne.s32.totalorder %s241, %s244
      %p250 = scmp.eq.s32.totalorder %s23, 0
      %p251 = por %p249, %p250
      %p252 = scmp.ne.s32.totalorder %s241, %s244
      %p253 = scmp.eq.s32.totalorder %s28, 7
      %p254 = por %p252, %p253
      %p255 = scmp.ne.s32.totalorder %s244, %s245
      %p256 = scmp.eq.s32.totalorder %s28, 0
      %p257 = por %p255, %p256
      %p258 = scmp.ne.s32.totalorder %s244, %s245
      %p259 = scmp.eq.s32.totalorder %s29, 7
      %p260 = por %p258, %p259
      %p262 = scmp.ne.s32.totalorder %s245, %s261
      %p263 = scmp.eq.s32.totalorder %s29, 0
      %p264 = por %p262, %p263
      %s265 = ssub.s32 %s30, %s42
      %p266 = scmp.eq.s32.totalorder %s265, 0
      %s268 = sadd.s32 %s267, 1
      %s269 = scalar_select %p266, %s267, %s268
      %p272 = pneg %p266
      %p273 = scmp.eq.s32.totalorder %s23, 7
      %p274 = por %p272, %p273
      %p275 = scmp.ne.s32.totalorder %s267, %s270
      %p276 = scmp.eq.s32.totalorder %s23, 0
      %p277 = por %p275, %p276
      %p278 = scmp.ne.s32.totalorder %s267, %s270
      %p279 = scmp.eq.s32.totalorder %s28, 7
      %p280 = por %p278, %p279
      %p281 = scmp.ne.s32.totalorder %s270, %s271
      %p282 = scmp.eq.s32.totalorder %s28, 0
      %p283 = por %p281, %p282
      %p284 = scmp.ne.s32.totalorder %s270, %s271
      %p285 = scmp.eq.s32.totalorder %s29, 7
      %p286 = por %p284, %p285
      %p288 = scmp.ne.s32.totalorder %s271, %s287
      %p289 = scmp.eq.s32.totalorder %s29, 0
      %p290 = por %p288, %p289
      %p291 = scmp.le.s32.totalorder 1, %s23
      %p292 = scmp.lt.s32.totalorder %s23, 9
      %p293 = pnand %p291, %p292
      %p294 = pneg %p293
      // Predicated region
      $region9: #{tpu_custom_call.1} parent=5 // pred_check
        _
      $region10: #{tpu_custom_call.1} parent=5 // pred_check_branch
        %296 = sbr.rel (%p293) target = $region12
      $region11: #{tpu_custom_call.1} parent=5 // pred_region
        %s297 = ssub.s32 %s23, 1
        // Predicated region
        $region13: #{tpu_custom_call.1} parent=11 // pred_check
          %p298 = pneg %p82
        $region14: #{tpu_custom_call.1} parent=11 // pred_check_branch
          %300 = sbr.rel (%p298) target = $region16
        $region15: #{tpu_custom_call.1} parent=11 // pred_region
          _
        $region16: #{tpu_custom_call.1} parent=11 // pred_fallthru
          _
        // Predicated region
        $region17: #{tpu_custom_call.1} parent=11 // pred_check
          %p301 = pneg %p103
        $region18: #{tpu_custom_call.1} parent=11 // pred_check_branch
          %303 = sbr.rel (%p301) target = $region20
        $region19: #{tpu_custom_call.1} parent=11 // pred_region
          _
        $region20: #{tpu_custom_call.1} parent=11 // pred_fallthru
          _
        // Predicated region
        $region21: #{tpu_custom_call.1} parent=11 // pred_check
          %p304 = pneg %p124
        $region22: #{tpu_custom_call.1} parent=11 // pred_check_branch
          %306 = sbr.rel (%p304) target = $region24
        $region23: #{tpu_custom_call.1} parent=11 // pred_region
          _
        $region24: #{tpu_custom_call.1} parent=11 // pred_fallthru
          _
        // Predicated region
        $region25: #{tpu_custom_call.1} parent=11 // pred_check
          %p307 = pneg %p145
        $region26: #{tpu_custom_call.1} parent=11 // pred_check_branch
          %309 = sbr.rel (%p307) target = $region28
        $region27: #{tpu_custom_call.1} parent=11 // pred_region
          _
        $region28: #{tpu_custom_call.1} parent=11 // pred_fallthru
          _
        // Predicated region
        $region29: #{tpu_custom_call.1} parent=11 // pred_check
          %p310 = pneg %p166
        $region30: #{tpu_custom_call.1} parent=11 // pred_check_branch
          %312 = sbr.rel (%p310) target = $region32
        $region31: #{tpu_custom_call.1} parent=11 // pred_region
          _
        $region32: #{tpu_custom_call.1} parent=11 // pred_fallthru
          _
        // Predicated region
        $region33: #{tpu_custom_call.1} parent=11 // pred_check
          %p313 = pneg %p187
        $region34: #{tpu_custom_call.1} parent=11 // pred_check_branch
          %315 = sbr.rel (%p313) target = $region36
        $region35: #{tpu_custom_call.1} parent=11 // pred_region
          _
        $region36: #{tpu_custom_call.1} parent=11 // pred_fallthru
          _
        // Predicated region
        $region37: #{tpu_custom_call.1} parent=11 // pred_check
          %p316 = pneg %p208
        $region38: #{tpu_custom_call.1} parent=11 // pred_check_branch
          %318 = sbr.rel (%p316) target = $region40
        $region39: #{tpu_custom_call.1} parent=11 // pred_region
          _
        $region40: #{tpu_custom_call.1} parent=11 // pred_fallthru
          _
        // Predicated region
        $region41: #{tpu_custom_call.1} parent=11 // pred_check
          %p319 = pneg %p229
        $region42: #{tpu_custom_call.1} parent=11 // pred_check_branch
          %321 = sbr.rel (%p319) target = $region44
        $region43: #{tpu_custom_call.1} parent=11 // pred_region
          _
        $region44: #{tpu_custom_call.1} parent=11 // pred_fallthru
          _
      $region12: #{tpu_custom_call.1} parent=5 // pred_fallthru
        _
      %p322 = scmp.lt.s32.totalorder %s23, 8
      // Predicated region
      $region45: #{tpu_custom_call.1} parent=5 // pred_check
        %p323 = pneg %p322
      $region46: #{tpu_custom_call.1} parent=5 // pred_check_branch
        %325 = sbr.rel (%p323) target = $region48
      $region47: #{tpu_custom_call.1} parent=5 // pred_region
        // Predicated region
        $region49: #{tpu_custom_call.1} parent=47 // pred_check
          %p326 = pneg %p55
        $region50: #{tpu_custom_call.1} parent=47 // pred_check_branch
          %328 = sbr.rel (%p326) target = $region52
        $region51: #{tpu_custom_call.1} parent=47 // pred_region
          %p329 = scmp.lt.s32.totalorder %s30, 1
          %s330 = scalar_select %p329, %s30, 1
          %s331 = smul.addr %s330, 54
          %s332 = smul.addr %s331, 8
          %s333 = scalar_lea.vmem %s0, %s332
        $region52: #{tpu_custom_call.1} parent=47 // pred_fallthru
          _
      $region48: #{tpu_custom_call.1} parent=5 // pred_fallthru
        _
      %p334 = scmp.le.s32.totalorder 1, %s23
      %p335 = scmp.lt.s32.totalorder %s23, 9
      %p336 = pnand %p334, %p335
      %p337 = pneg %p336
      // Predicated region
      $region53: #{tpu_custom_call.1} parent=5 // pred_check
        _
      $region54: #{tpu_custom_call.1} parent=5 // pred_check_branch
        %339 = sbr.rel (%p336) target = $region56
      $region55: #{tpu_custom_call.1} parent=5 // pred_region
        %s340 = ssub.s32 %s23, 1
        %p341 = scmp.lt.s32.totalorder %s32, 1
        %s342 = scalar_select %p341, %s32, 1
        %s343 = smul.addr %s342, 54
        %s344 = smul.addr %s343, 8
        %s345 = scalar_lea.vmem %s0, %s344
        %p346 = pneg %p61
        %p347 = pneg %p58
        %p348 = pneg %p82
        %p349 = pneg %p79
        %p350 = pneg %p103
        %p351 = pneg %p100
        %p352 = pneg %p124
        %p353 = pneg %p121
        %p354 = pneg %p145
        %p355 = pneg %p142
        %p356 = pneg %p166
        %p357 = pneg %p163
        %p358 = pneg %p187
        %p359 = pneg %p184
        %p360 = pneg %p208
        %p361 = pneg %p205
        %p362 = pneg %p229
        %p363 = pneg %p226
        %p364 = pneg %p257
        %p365 = pneg %p254
        %s366 = sand.u32 %s244, 1
        %s367 = scalar_lea.sflag [#allocation4], %s366
        %s368 = sand.u32 %s244, 1
        %s369 = smul.addr %s368, 64
        %s370 = scalar_lea.vmem [#allocation3], %s369
        %p371 = pneg %p283
        %p372 = pneg %p280
        %s373 = sand.u32 %s270, 1
        %s374 = scalar_lea.sflag [#allocation6], %s373
        %s375 = sand.u32 %s270, 1
        %s376 = scalar_lea.vmem [#allocation5], %s375
        %p377 = scmp.lt.s32.totalorder %s32, 1
        %s378 = scalar_select %p377, %s32, 1
        %s379 = smul.addr %s378, 54
        %s380 = smul.addr %s379, 8
        %s381 = scalar_lea.vmem %s0, %s380
        %s382 = smul.u32 4, %s33
        %s383 = smul.u32 %s33, 4
        %s384 = smul.u32 %s383, 24
        %s385 = scalar_lea.vmem %s381, %s384
        %v386 = vld [vmem:[%s385] sm:$0xff]
        %v387 = vld [vmem:[%s385 + $0x8] sm:$0xff]
        %v388 = vld [vmem:[%s385 + $0x10] sm:$0x3]
        %v389 = vld [vmem:[%s385 + $0x18] sm:$0xff]
        %v390 = vld [vmem:[%s385 + $0x20] sm:$0xff]
        %v391 = vld [vmem:[%s385 + $0x28] sm:$0x3]
        %v392 = vld [vmem:[%s385 + $0x30] sm:$0xff]
        %v393 = vld [vmem:[%s385 + $0x38] sm:$0xff]
        %v394 = vld [vmem:[%s385 + $0x40] sm:$0x3]
        %v395 = vld [vmem:[%s385 + $0x48] sm:$0xff]
        %v396 = vld [vmem:[%s385 + $0x50] sm:$0xff]
        %v397 = vld [vmem:[%s385 + $0x58] sm:$0x3]
        %v398 = vld [vmem:[%s385 + $0x60] sm:$0xff]
        %v399 = vld [vmem:[%s385 + $0x68] sm:$0xff]
        %v400 = vld [vmem:[%s385 + $0x70] sm:$0x3]
        %v401 = vld [vmem:[%s385 + $0x78] sm:$0xff]
        %v402 = vld [vmem:[%s385 + $0x80] sm:$0xff]
        %v403 = vld [vmem:[%s385 + $0x88] sm:$0x3]
        %v422 = vcombine.high %v386, %v386
        %v424 = vunpack.c.l.s4 1983009808
        %v425 = vunpack.c.0.s8 %v424
        %v426 = vlaneseq
        %v427 = vshrl.u32 %v426, 7
        %v428 = vsub.s32 %v425, %v427
        %v429 = vrot.slane %v386, %v428
        %v431 = vunpack.c.l.s4 1983009808
        %v432 = vunpack.c.0.s8 %v431
        %v433 = vlaneseq
        %v434 = vshrl.u32 %v433, 7
        %v435 = vsub.s32 %v432, %v434
        %v436 = vrot.slane %v422, %v435
        %v437 = vcombine.high %v429, %v429
        %v438 = vcombine.high %v436, %v436
        %v439 = vcombine.high %v387, %v387
        %v441 = vunpack.c.l.s4 1983009808
        %v442 = vunpack.c.0.s8 %v441
        %v443 = vlaneseq
        %v444 = vshrl.u32 %v443, 7
        %v445 = vsub.s32 %v442, %v444
        %v446 = vrot.slane %v387, %v445
        %v448 = vunpack.c.l.s4 1983009808
        %v449 = vunpack.c.0.s8 %v448
        %v450 = vlaneseq
        %v451 = vshrl.u32 %v450, 7
        %v452 = vsub.s32 %v449, %v451
        %v453 = vrot.slane %v439, %v452
        %v454 = vcombine.high %v446, %v446
        %v455 = vcombine.high %v453, %v453
        %v457 = vunpack.c.l.s4 1983009808
        %v458 = vunpack.c.0.s8 %v457
        %v459 = vlaneseq
        %v460 = vshrl.u32 %v459, 7
        %v461 = vsub.s32 %v458, %v460
        %v462 = vrot.slane %v388, %v461
        %v463 = vcombine.high %v389, %v389
        %v465 = vunpack.c.l.s4 1983009808
        %v466 = vunpack.c.0.s8 %v465
        %v467 = vlaneseq
        %v468 = vshrl.u32 %v467, 7
        %v469 = vsub.s32 %v466, %v468
        %v470 = vrot.slane %v389, %v469
        %v472 = vunpack.c.l.s4 1983009808
        %v473 = vunpack.c.0.s8 %v472
        %v474 = vlaneseq
        %v475 = vshrl.u32 %v474, 7
        %v476 = vsub.s32 %v473, %v475
        %v477 = vrot.slane %v463, %v476
        %v478 = vcombine.high %v470, %v470
        %v479 = vcombine.high %v477, %v477
        %v480 = vcombine.high %v390, %v390
        %v482 = vunpack.c.l.s4 1983009808
        %v483 = vunpack.c.0.s8 %v482
        %v484 = vlaneseq
        %v485 = vshrl.u32 %v484, 7
        %v486 = vsub.s32 %v483, %v485
        %v487 = vrot.slane %v390, %v486
        %v489 = vunpack.c.l.s4 1983009808
        %v490 = vunpack.c.0.s8 %v489
        %v491 = vlaneseq
        %v492 = vshrl.u32 %v491, 7
        %v493 = vsub.s32 %v490, %v492
        %v494 = vrot.slane %v480, %v493
        %v495 = vcombine.high %v487, %v487
        %v496 = vcombine.high %v494, %v494
        %v498 = vunpack.c.l.s4 1983009808
        %v499 = vunpack.c.0.s8 %v498
        %v500 = vlaneseq
        %v501 = vshrl.u32 %v500, 7
        %v502 = vsub.s32 %v499, %v501
        %v503 = vrot.slane %v391, %v502
        %v504 = vcombine.high %v392, %v392
        %v506 = vunpack.c.l.s4 1983009808
        %v507 = vunpack.c.0.s8 %v506
        %v508 = vlaneseq
        %v509 = vshrl.u32 %v508, 7
        %v510 = vsub.s32 %v507, %v509
        %v511 = vrot.slane %v392, %v510
        %v513 = vunpack.c.l.s4 1983009808
        %v514 = vunpack.c.0.s8 %v513
        %v515 = vlaneseq
        %v516 = vshrl.u32 %v515, 7
        %v517 = vsub.s32 %v514, %v516
        %v518 = vrot.slane %v504, %v517
        %v519 = vcombine.high %v511, %v511
        %v520 = vcombine.high %v518, %v518
        %v521 = vcombine.high %v393, %v393
        %v523 = vunpack.c.l.s4 1983009808
        %v524 = vunpack.c.0.s8 %v523
        %v525 = vlaneseq
        %v526 = vshrl.u32 %v525, 7
        %v527 = vsub.s32 %v524, %v526
        %v528 = vrot.slane %v393, %v527
        %v530 = vunpack.c.l.s4 1983009808
        %v531 = vunpack.c.0.s8 %v530
        %v532 = vlaneseq
        %v533 = vshrl.u32 %v532, 7
        %v534 = vsub.s32 %v531, %v533
        %v535 = vrot.slane %v521, %v534
        %v536 = vcombine.high %v528, %v528
        %v537 = vcombine.high %v535, %v535
        %v539 = vunpack.c.l.s4 1983009808
        %v540 = vunpack.c.0.s8 %v539
        %v541 = vlaneseq
        %v542 = vshrl.u32 %v541, 7
        %v543 = vsub.s32 %v540, %v542
        %v544 = vrot.slane %v394, %v543
        %v545 = vcombine.high %v395, %v395
        %v547 = vunpack.c.l.s4 1983009808
        %v548 = vunpack.c.0.s8 %v547
        %v549 = vlaneseq
        %v550 = vshrl.u32 %v549, 7
        %v551 = vsub.s32 %v548, %v550
        %v552 = vrot.slane %v395, %v551
        %v554 = vunpack.c.l.s4 1983009808
        %v555 = vunpack.c.0.s8 %v554
        %v556 = vlaneseq
        %v557 = vshrl.u32 %v556, 7
        %v558 = vsub.s32 %v555, %v557
        %v559 = vrot.slane %v545, %v558
        %v560 = vcombine.high %v552, %v552
        %v561 = vcombine.high %v559, %v559
        %v562 = vcombine.high %v396, %v396
        %v564 = vunpack.c.l.s4 1983009808
        %v565 = vunpack.c.0.s8 %v564
        %v566 = vlaneseq
        %v567 = vshrl.u32 %v566, 7
        %v568 = vsub.s32 %v565, %v567
        %v569 = vrot.slane %v396, %v568
        %v571 = vunpack.c.l.s4 1983009808
        %v572 = vunpack.c.0.s8 %v571
        %v573 = vlaneseq
        %v574 = vshrl.u32 %v573, 7
        %v575 = vsub.s32 %v572, %v574
        %v576 = vrot.slane %v562, %v575
        %v577 = vcombine.high %v569, %v569
        %v578 = vcombine.high %v576, %v576
        %v580 = vunpack.c.l.s4 1983009808
        %v581 = vunpack.c.0.s8 %v580
        %v582 = vlaneseq
        %v583 = vshrl.u32 %v582, 7
        %v584 = vsub.s32 %v581, %v583
        %v585 = vrot.slane %v397, %v584
        %v586 = vcombine.high %v398, %v398
        %v588 = vunpack.c.l.s4 1983009808
        %v589 = vunpack.c.0.s8 %v588
        %v590 = vlaneseq
        %v591 = vshrl.u32 %v590, 7
        %v592 = vsub.s32 %v589, %v591
        %v593 = vrot.slane %v398, %v592
        %v595 = vunpack.c.l.s4 1983009808
        %v596 = vunpack.c.0.s8 %v595
        %v597 = vlaneseq
        %v598 = vshrl.u32 %v597, 7
        %v599 = vsub.s32 %v596, %v598
        %v600 = vrot.slane %v586, %v599
        %v601 = vcombine.high %v593, %v593
        %v602 = vcombine.high %v600, %v600
        %v603 = vcombine.high %v399, %v399
        %v605 = vunpack.c.l.s4 1983009808
        %v606 = vunpack.c.0.s8 %v605
        %v607 = vlaneseq
        %v608 = vshrl.u32 %v607, 7
        %v609 = vsub.s32 %v606, %v608
        %v610 = vrot.slane %v399, %v609
        %v612 = vunpack.c.l.s4 1983009808
        %v613 = vunpack.c.0.s8 %v612
        %v614 = vlaneseq
        %v615 = vshrl.u32 %v614, 7
        %v616 = vsub.s32 %v613, %v615
        %v617 = vrot.slane %v603, %v616
        %v618 = vcombine.high %v610, %v610
        %v619 = vcombine.high %v617, %v617
        %v621 = vunpack.c.l.s4 1983009808
        %v622 = vunpack.c.0.s8 %v621
        %v623 = vlaneseq
        %v624 = vshrl.u32 %v623, 7
        %v625 = vsub.s32 %v622, %v624
        %v626 = vrot.slane %v400, %v625
        %v627 = vcombine.high %v401, %v401
        %v629 = vunpack.c.l.s4 1983009808
        %v630 = vunpack.c.0.s8 %v629
        %v631 = vlaneseq
        %v632 = vshrl.u32 %v631, 7
        %v633 = vsub.s32 %v630, %v632
        %v634 = vrot.slane %v401, %v633
        %v636 = vunpack.c.l.s4 1983009808
        %v637 = vunpack.c.0.s8 %v636
        %v638 = vlaneseq
        %v639 = vshrl.u32 %v638, 7
        %v640 = vsub.s32 %v637, %v639
        %v641 = vrot.slane %v627, %v640
        %v642 = vcombine.high %v634, %v634
        %v643 = vcombine.high %v641, %v641
        %v644 = vcombine.high %v402, %v402
        %v646 = vunpack.c.l.s4 1983009808
        %v647 = vunpack.c.0.s8 %v646
        %v648 = vlaneseq
        %v649 = vshrl.u32 %v648, 7
        %v650 = vsub.s32 %v647, %v649
        %v651 = vrot.slane %v402, %v650
        %v653 = vunpack.c.l.s4 1983009808
        %v654 = vunpack.c.0.s8 %v653
        %v655 = vlaneseq
        %v656 = vshrl.u32 %v655, 7
        %v657 = vsub.s32 %v654, %v656
        %v658 = vrot.slane %v644, %v657
        %v659 = vcombine.high %v651, %v651
        %v660 = vcombine.high %v658, %v658
        %v662 = vunpack.c.l.s4 1983009808
        %v663 = vunpack.c.0.s8 %v662
        %v664 = vlaneseq
        %v665 = vshrl.u32 %v664, 7
        %v666 = vsub.s32 %v663, %v665
        %v667 = vrot.slane %v403, %v666
        %v668 = vld [vmem:[%s1] sm:$0xff]
        %v669 = vld [vmem:[%s1 + $0x8] sm:$0xff]
        %v670 = vld [vmem:[%s2] sm:$0x1]
        %v672 = vlaneseq
        %v673 = vshrl.u32 %v672, 7
        %v674 = vsub.s32 0, %v673
        %v675 = vrot.slane %v670, %v674
        %v677 = vcombine.low %v429, %v437
        %v678 = vcombine.low %v436, %v438
        %v680 = vunpack.c.l.s4 1983009808
        %v681 = vunpack.c.0.s8 %v680
        %v682 = vlaneseq
        %v683 = vshrl.u32 %v682, 7
        %v684 = vsub.s32 %v681, %v683
        %v685 = vrot.slane %v677, %v684
        %v687 = vunpack.c.l.s4 1983009808
        %v688 = vunpack.c.0.s8 %v687
        %v689 = vlaneseq
        %v690 = vshrl.u32 %v689, 7
        %v691 = vsub.s32 %v688, %v690
        %v692 = vrot.slane %v678, %v691
        %v693 = vcombine.low %v685, %v692
        %v694 = vcombine.low %v446, %v454
        %v695 = vcombine.low %v453, %v455
        %v697 = vunpack.c.l.s4 1983009808
        %v698 = vunpack.c.0.s8 %v697
        %v699 = vlaneseq
        %v700 = vshrl.u32 %v699, 7
        %v701 = vsub.s32 %v698, %v700
        %v702 = vrot.slane %v694, %v701
        %v704 = vunpack.c.l.s4 1983009808
        %v705 = vunpack.c.0.s8 %v704
        %v706 = vlaneseq
        %v707 = vshrl.u32 %v706, 7
        %v708 = vsub.s32 %v705, %v707
        %v709 = vrot.slane %v695, %v708
        %v710 = vcombine.low %v702, %v709
        %v711 = vcombine.low %v462, %v470
        %v712 = vcombine.low %v478, %v477
        %v714 = vunpack.c.l.s4 1983009808
        %v715 = vunpack.c.0.s8 %v714
        %v716 = vlaneseq
        %v717 = vshrl.u32 %v716, 7
        %v718 = vsub.s32 %v715, %v717
        %v719 = vrot.slane %v711, %v718
        %v721 = vunpack.c.l.s4 1983009808
        %v722 = vunpack.c.0.s8 %v721
        %v723 = vlaneseq
        %v724 = vshrl.u32 %v723, 7
        %v725 = vsub.s32 %v722, %v724
        %v726 = vrot.slane %v712, %v725
        %v727 = vcombine.low %v719, %v726
        %v728 = vcombine.low %v479, %v487
        %v729 = vcombine.low %v495, %v494
        %v731 = vunpack.c.l.s4 1983009808
        %v732 = vunpack.c.0.s8 %v731
        %v733 = vlaneseq
        %v734 = vshrl.u32 %v733, 7
        %v735 = vsub.s32 %v732, %v734
        %v736 = vrot.slane %v728, %v735
        %v738 = vunpack.c.l.s4 1983009808
        %v739 = vunpack.c.0.s8 %v738
        %v740 = vlaneseq
        %v741 = vshrl.u32 %v740, 7
        %v742 = vsub.s32 %v739, %v741
        %v743 = vrot.slane %v729, %v742
        %v744 = vcombine.low %v736, %v743
        %v745 = vcombine.low %v496, %v503
        %v746 = vcombine.low %v511, %v519
        %v748 = vunpack.c.l.s4 1983009808
        %v749 = vunpack.c.0.s8 %v748
        %v750 = vlaneseq
        %v751 = vshrl.u32 %v750, 7
        %v752 = vsub.s32 %v749, %v751
        %v753 = vrot.slane %v745, %v752
        %v755 = vunpack.c.l.s4 1983009808
        %v756 = vunpack.c.0.s8 %v755
        %v757 = vlaneseq
        %v758 = vshrl.u32 %v757, 7
        %v759 = vsub.s32 %v756, %v758
        %v760 = vrot.slane %v746, %v759
        %v761 = vcombine.low %v753, %v760
        %v762 = vcombine.low %v518, %v520
        %v763 = vcombine.low %v528, %v536
        %v765 = vunpack.c.l.s4 1983009808
        %v766 = vunpack.c.0.s8 %v765
        %v767 = vlaneseq
        %v768 = vshrl.u32 %v767, 7
        %v769 = vsub.s32 %v766, %v768
        %v770 = vrot.slane %v762, %v769
        %v772 = vunpack.c.l.s4 1983009808
        %v773 = vunpack.c.0.s8 %v772
        %v774 = vlaneseq
        %v775 = vshrl.u32 %v774, 7
        %v776 = vsub.s32 %v773, %v775
        %v777 = vrot.slane %v763, %v776
        %v778 = vcombine.low %v770, %v777
        %v779 = vcombine.low %v535, %v537
        %v780 = vcombine.low %v544, %v552
        %v782 = vunpack.c.l.s4 1983009808
        %v783 = vunpack.c.0.s8 %v782
        %v784 = vlaneseq
        %v785 = vshrl.u32 %v784, 7
        %v786 = vsub.s32 %v783, %v785
        %v787 = vrot.slane %v779, %v786
        %v789 = vunpack.c.l.s4 1983009808
        %v790 = vunpack.c.0.s8 %v789
        %v791 = vlaneseq
        %v792 = vshrl.u32 %v791, 7
        %v793 = vsub.s32 %v790, %v792
        %v794 = vrot.slane %v780, %v793
        %v795 = vcombine.low %v787, %v794
        %v796 = vcombine.low %v560, %v559
        %v797 = vcombine.low %v561, %v569
        %v799 = vunpack.c.l.s4 1983009808
        %v800 = vunpack.c.0.s8 %v799
        %v801 = vlaneseq
        %v802 = vshrl.u32 %v801, 7
        %v803 = vsub.s32 %v800, %v802
        %v804 = vrot.slane %v796, %v803
        %v806 = vunpack.c.l.s4 1983009808
        %v807 = vunpack.c.0.s8 %v806
        %v808 = vlaneseq
        %v809 = vshrl.u32 %v808, 7
        %v810 = vsub.s32 %v807, %v809
        %v811 = vrot.slane %v797, %v810
        %v812 = vcombine.low %v804, %v811
        %v813 = vcombine.low %v577, %v576
        %v814 = vcombine.low %v578, %v585
        %v816 = vunpack.c.l.s4 1983009808
        %v817 = vunpack.c.0.s8 %v816
        %v818 = vlaneseq
        %v819 = vshrl.u32 %v818, 7
        %v820 = vsub.s32 %v817, %v819
        %v821 = vrot.slane %v813, %v820
        %v823 = vunpack.c.l.s4 1983009808
        %v824 = vunpack.c.0.s8 %v823
        %v825 = vlaneseq
        %v826 = vshrl.u32 %v825, 7
        %v827 = vsub.s32 %v824, %v826
        %v828 = vrot.slane %v814, %v827
        %v829 = vcombine.low %v821, %v828
        %v830 = vcombine.low %v593, %v601
        %v831 = vcombine.low %v600, %v602
        %v833 = vunpack.c.l.s4 1983009808
        %v834 = vunpack.c.0.s8 %v833
        %v835 = vlaneseq
        %v836 = vshrl.u32 %v835, 7
        %v837 = vsub.s32 %v834, %v836
        %v838 = vrot.slane %v830, %v837
        %v840 = vunpack.c.l.s4 1983009808
        %v841 = vunpack.c.0.s8 %v840
        %v842 = vlaneseq
        %v843 = vshrl.u32 %v842, 7
        %v844 = vsub.s32 %v841, %v843
        %v845 = vrot.slane %v831, %v844
        %v846 = vcombine.low %v838, %v845
        %v847 = vcombine.low %v610, %v618
        %v848 = vcombine.low %v617, %v619
        %v850 = vunpack.c.l.s4 1983009808
        %v851 = vunpack.c.0.s8 %v850
        %v852 = vlaneseq
        %v853 = vshrl.u32 %v852, 7
        %v854 = vsub.s32 %v851, %v853
        %v855 = vrot.slane %v847, %v854
        %v857 = vunpack.c.l.s4 1983009808
        %v858 = vunpack.c.0.s8 %v857
        %v859 = vlaneseq
        %v860 = vshrl.u32 %v859, 7
        %v861 = vsub.s32 %v858, %v860
        %v862 = vrot.slane %v848, %v861
        %v863 = vcombine.low %v855, %v862
        %v864 = vcombine.low %v626, %v634
        %v865 = vcombine.low %v642, %v641
        %v867 = vunpack.c.l.s4 1983009808
        %v868 = vunpack.c.0.s8 %v867
        %v869 = vlaneseq
        %v870 = vshrl.u32 %v869, 7
        %v871 = vsub.s32 %v868, %v870
        %v872 = vrot.slane %v864, %v871
        %v874 = vunpack.c.l.s4 1983009808
        %v875 = vunpack.c.0.s8 %v874
        %v876 = vlaneseq
        %v877 = vshrl.u32 %v876, 7
        %v878 = vsub.s32 %v875, %v877
        %v879 = vrot.slane %v865, %v878
        %v880 = vcombine.low %v872, %v879
        %v881 = vcombine.low %v643, %v651
        %v882 = vcombine.low %v659, %v658
        %v884 = vunpack.c.l.s4 1983009808
        %v885 = vunpack.c.0.s8 %v884
        %v886 = vlaneseq
        %v887 = vshrl.u32 %v886, 7
        %v888 = vsub.s32 %v885, %v887
        %v889 = vrot.slane %v881, %v888
        %v891 = vunpack.c.l.s4 1983009808
        %v892 = vunpack.c.0.s8 %v891
        %v893 = vlaneseq
        %v894 = vshrl.u32 %v893, 7
        %v895 = vsub.s32 %v892, %v894
        %v896 = vrot.slane %v882, %v895
        %v897 = vcombine.low %v889, %v896
        %v898 = vcombine.low %v660, %v667
        %v900 = vunpack.c.l.s4 1983009808
        %v901 = vunpack.c.0.s8 %v900
        %v902 = vlaneseq
        %v903 = vshrl.u32 %v902, 7
        %v904 = vsub.s32 %v901, %v903
        %v905 = vrot.slane %v898, %v904
        %vm906 = vcmask 130048
        %v907 = vsel %vm906, %v693, 0
        %v909 = vsel %vm906, %v710, 0
        %v911 = vsel %vm906, %v727, 0
        %v913 = vsel %vm906, %v744, 0
        %v915 = vsel %vm906, %v761, 0
        %v917 = vsel %vm906, %v778, 0
        %v919 = vsel %vm906, %v795, 0
        %v921 = vsel %vm906, %v812, 0
        %v923 = vsel %vm906, %v829, 0
        %v925 = vsel %vm906, %v846, 0
        %v927 = vsel %vm906, %v863, 0
        %v929 = vsel %vm906, %v880, 0
        %v931 = vsel %vm906, %v897, 0
        %v933 = vsel %vm906, %v905, 0
        %935 = vmatprep.subr.mxu0 0.0
        %936 = vmatpush1.msra.mxu0 %v668
        %937 = vmatprep.subr.mxu0 0.0
        %938 = vmatpush1.msra.mxu0 %v669
        %939 = vmatprep.subr.mxu0 0.0
        %940 = vmatpush1.msra.mxu0 0.0
        %941 = vmatprep.subr.mxu0 0.0
        %942 = vmatpush1.msra.mxu0 0.0
        %943 = vmatprep.subr.mxu0 0.0
        %944 = vmatpush1.msra.mxu0 0.0
        %945 = vmatprep.subr.mxu0 0.0
        %946 = vmatpush1.msra.mxu0 0.0
        %947 = vmatprep.subr.mxu0 0.0
        %948 = vmatpush1.msra.mxu0 0.0
        %949 = vmatprep.subr.mxu0 0.0
        %950 = vmatpush1.msra.mxu0 0.0
        %951 = vmatprep.subr.mxu0 0.0
        %952 = vmatpush1.msra.mxu0 0.0
        %953 = vmatprep.subr.mxu0 0.0
        %954 = vmatpush1.msra.mxu0 0.0
        %955 = vmatprep.subr.mxu0 0.0
        %956 = vmatpush1.msra.mxu0 0.0
        %957 = vmatprep.subr.mxu0 0.0
        %958 = vmatpush1.msra.mxu0 0.0
        %959 = vmatprep.subr.mxu0 0.0
        %960 = vmatpush1.msra.mxu0 0.0
        %961 = vmatprep.subr.mxu0 0.0
        %962 = vmatpush1.msra.mxu0 0.0
        %963 = vmatprep.subr.mxu0 0.0
        %964 = vmatpush1.msra.mxu0 0.0
        %965 = vmatprep.subr.mxu0 0.0
        %966 = vmatpush1.msra.mxu0 0.0
        %967 = vmatprep.subr.mxu0 0.0
        %968 = vmatpush1.msra.mxu0 0.0
        %969 = vmatprep.subr.mxu0 0.0
        %970 = vmatpush1.msra.mxu0 0.0
        %971 = vmatprep.subr.mxu0 0.0
        %972 = vmatpush1.msra.mxu0 0.0
        %973 = vmatprep.subr.mxu0 0.0
        %974 = vmatpush1.msra.mxu0 0.0
        %975 = vmatprep.subr.mxu0 0.0
        %976 = vmatpush1.msra.mxu0 0.0
        %977 = vmatprep.subr.mxu0 0.0
        %978 = vmatpush1.msra.mxu0 0.0
        %979 = vmatprep.subr.mxu0 0.0
        %980 = vmatpush1.msra.mxu0 0.0
        %981 = vmatprep.subr.mxu0 0.0
        %982 = vmatpush1.msra.mxu0 0.0
        %983 = vmatprep.subr.mxu0 0.0
        %984 = vmatpush1.msra.mxu0 0.0
        %985 = vmatprep.subr.mxu0 0.0
        %986 = vmatpush1.msra.mxu0 0.0
        %987 = vmatprep.subr.mxu0 0.0
        %988 = vmatpush1.msra.mxu0 0.0
        %989 = vmatprep.subr.mxu0 0.0
        %990 = vmatpush1.msra.mxu0 0.0
        %991 = vmatprep.subr.mxu0 0.0
        %992 = vmatpush1.msra.mxu0 0.0
        %993 = vmatprep.subr.mxu0 0.0
        %994 = vmatpush1.msra.mxu0 0.0
        %995 = vmatprep.subr.mxu0 0.0
        %996 = vmatpush1.msra.mxu0 0.0
        %997 = vmatprep.subr.mxu0 0.0
        %998 = vmatpush1.msra.mxu0 0.0
        %999 = vmatprep.mubr.f32.mxu0 0.0
        %1000 = vmatmul.mubr.f32.gmra.mrb[0].mxu0 %v907
        %v1001 = vpop.f32.mrb[0].mxu0
        %v1002 = vadd.f32 %v675, %v1001
        %v1003 = vpop.f32.mrb[0].mxu0
        %1004 = vmatprep.mubr.f32.mxu0 0.0
        %1005 = vmatmul.mubr.f32.gmra.mrb[0].mxu0 %v909
        %v1006 = vpop.f32.mrb[0].mxu0
        %v1007 = vadd.f32 %v675, %v1006
        %v1008 = vpop.f32.mrb[0].mxu0
        %1009 = vmatprep.mubr.f32.mxu0 0.0
        %1010 = vmatmul.mubr.f32.gmra.mrb[0].mxu0 %v911
        %v1011 = vpop.f32.mrb[0].mxu0
        %v1012 = vadd.f32 %v675, %v1011
        %v1013 = vpop.f32.mrb[0].mxu0
        %1014 = vmatprep.mubr.f32.mxu0 0.0
        %1015 = vmatmul.mubr.f32.gmra.mrb[0].mxu0 %v913
        %v1016 = vpop.f32.mrb[0].mxu0
        %v1017 = vadd.f32 %v675, %v1016
        %v1018 = vpop.f32.mrb[0].mxu0
        %1019 = vmatprep.mubr.f32.mxu0 0.0
        %1020 = vmatmul.mubr.f32.gmra.mrb[0].mxu0 %v915
        %v1021 = vpop.f32.mrb[0].mxu0
        %v1022 = vadd.f32 %v675, %v1021
        %v1023 = vpop.f32.mrb[0].mxu0
        %1024 = vmatprep.mubr.f32.mxu0 0.0
        %1025 = vmatmul.mubr.f32.gmra.mrb[0].mxu0 %v917
        %v1026 = vpop.f32.mrb[0].mxu0
        %v1027 = vadd.f32 %v675, %v1026
        %v1028 = vpop.f32.mrb[0].mxu0
        %1029 = vmatprep.mubr.f32.mxu0 0.0
        %1030 = vmatmul.mubr.f32.gmra.mrb[0].mxu0 %v919
        %v1031 = vpop.f32.mrb[0].mxu0
        %v1032 = vadd.f32 %v675, %v1031
        %v1033 = vpop.f32.mrb[0].mxu0
        %1034 = vmatprep.mubr.f32.mxu0 0.0
        %1035 = vmatmul.mubr.f32.gmra.mrb[0].mxu0 %v921
        %v1036 = vpop.f32.mrb[0].mxu0
        %v1037 = vadd.f32 %v675, %v1036
        %v1038 = vpop.f32.mrb[0].mxu0
        %1039 = vmatprep.mubr.f32.mxu0 0.0
        %1040 = vmatmul.mubr.f32.gmra.mrb[0].mxu0 %v923
        %v1041 = vpop.f32.mrb[0].mxu0
        %v1042 = vadd.f32 %v675, %v1041
        %v1043 = vpop.f32.mrb[0].mxu0
        %1044 = vmatprep.mubr.f32.mxu0 0.0
        %1045 = vmatmul.mubr.f32.gmra.mrb[0].mxu0 %v925
        %v1046 = vpop.f32.mrb[0].mxu0
        %v1047 = vadd.f32 %v675, %v1046
        %v1048 = vpop.f32.mrb[0].mxu0
        %1049 = vmatprep.mubr.f32.mxu0 0.0
        %1050 = vmatmul.mubr.f32.gmra.mrb[0].mxu0 %v927
        %v1051 = vpop.f32.mrb[0].mxu0
        %v1052 = vadd.f32 %v675, %v1051
        %v1053 = vpop.f32.mrb[0].mxu0
        %1054 = vmatprep.mubr.f32.mxu0 0.0
        %1055 = vmatmul.mubr.f32.gmra.mrb[0].mxu0 %v929
        %v1056 = vpop.f32.mrb[0].mxu0
        %v1057 = vadd.f32 %v675, %v1056
        %v1058 = vpop.f32.mrb[0].mxu0
        %1059 = vmatprep.mubr.f32.mxu0 0.0
        %1060 = vmatmul.mubr.f32.gmra.mrb[0].mxu0 %v931
        %v1061 = vpop.f32.mrb[0].mxu0
        %v1062 = vadd.f32 %v675, %v1061
        %v1063 = vpop.f32.mrb[0].mxu0
        %1064 = vmatprep.mubr.f32.mxu0 0.0
        %1065 = vmatmul.mubr.f32.gmra.mrb[0].mxu0 %v933
        %v1066 = vpop.f32.mrb[0].mxu0
        %v1067 = vadd.f32 %v675, %v1066
        %v1068 = vpop.f32.mrb[0].mxu0
        %1069 = vdwg.mxu0
        %v1070 = vxor.u32 %v1002, 2147483648
        %v1071 = vxor.u32 %v1007, 2147483648
        %v1072 = vxor.u32 %v1012, 2147483648
        %v1073 = vxor.u32 %v1017, 2147483648
        %v1074 = vxor.u32 %v1022, 2147483648
        %v1075 = vxor.u32 %v1027, 2147483648
        %v1076 = vxor.u32 %v1032, 2147483648
        %v1077 = vxor.u32 %v1037, 2147483648
        %v1078 = vxor.u32 %v1042, 2147483648
        %v1079 = vxor.u32 %v1047, 2147483648
        %v1080 = vxor.u32 %v1052, 2147483648
        %v1081 = vxor.u32 %v1057, 2147483648
        %v1082 = vxor.u32 %v1062, 2147483648
        %v1083 = vxor.u32 %v1067, 2147483648
        %v1084 = vmul.f32 %v1070, 1.442695
        %v1085 = vpow.pop %v1084
        %v1086 = vmul.f32 %v1071, 1.442695
        %v1087 = vpow.pop %v1086
        %v1088 = vmul.f32 %v1072, 1.442695
        %v1089 = vpow.pop %v1088
        %v1090 = vmul.f32 %v1073, 1.442695
        %v1091 = vpow.pop %v1090
        %v1092 = vmul.f32 %v1074, 1.442695
        %v1093 = vpow.pop %v1092
        %v1094 = vmul.f32 %v1075, 1.442695
        %v1095 = vpow.pop %v1094
        %v1096 = vmul.f32 %v1076, 1.442695
        %v1097 = vpow.pop %v1096
        %v1098 = vmul.f32 %v1077, 1.442695
        %v1099 = vpow.pop %v1098
        %v1100 = vmul.f32 %v1078, 1.442695
        %v1101 = vpow.pop %v1100
        %v1102 = vmul.f32 %v1079, 1.442695
        %v1103 = vpow.pop %v1102
        %v1104 = vmul.f32 %v1080, 1.442695
        %v1105 = vpow.pop %v1104
        %v1106 = vmul.f32 %v1081, 1.442695
        %v1107 = vpow.pop %v1106
        %v1108 = vmul.f32 %v1082, 1.442695
        %v1109 = vpow.pop %v1108
        %v1110 = vmul.f32 %v1083, 1.442695
        %v1111 = vpow.pop %v1110
        %v1112 = vadd.f32 %v1085, 1.0
        %v1113 = vadd.f32 %v1087, 1.0
        %v1114 = vadd.f32 %v1089, 1.0
        %v1115 = vadd.f32 %v1091, 1.0
        %v1116 = vadd.f32 %v1093, 1.0
        %v1117 = vadd.f32 %v1095, 1.0
        %v1118 = vadd.f32 %v1097, 1.0
        %v1119 = vadd.f32 %v1099, 1.0
        %v1120 = vadd.f32 %v1101, 1.0
        %v1121 = vadd.f32 %v1103, 1.0
        %v1122 = vadd.f32 %v1105, 1.0
        %v1123 = vadd.f32 %v1107, 1.0
        %v1124 = vadd.f32 %v1109, 1.0
        %v1125 = vadd.f32 %v1111, 1.0
        %v1126 = vrcp.pop %v1112
        %v1127 = vmul.f32 1.0, %v1126
        %v1128 = vrcp.pop %v1113
        %v1129 = vmul.f32 1.0, %v1128
        %v1130 = vrcp.pop %v1114
        %v1131 = vmul.f32 1.0, %v1130
        %v1132 = vrcp.pop %v1115
        %v1133 = vmul.f32 1.0, %v1132
        %v1134 = vrcp.pop %v1116
        %v1135 = vmul.f32 1.0, %v1134
        %v1136 = vrcp.pop %v1117
        %v1137 = vmul.f32 1.0, %v1136
        %v1138 = vrcp.pop %v1118
        %v1139 = vmul.f32 1.0, %v1138
        %v1140 = vrcp.pop %v1119
        %v1141 = vmul.f32 1.0, %v1140
        %v1142 = vrcp.pop %v1120
        %v1143 = vmul.f32 1.0, %v1142
        %v1144 = vrcp.pop %v1121
        %v1145 = vmul.f32 1.0, %v1144
        %v1146 = vrcp.pop %v1122
        %v1147 = vmul.f32 1.0, %v1146
        %v1148 = vrcp.pop %v1123
        %v1149 = vmul.f32 1.0, %v1148
        %v1150 = vrcp.pop %v1124
        %v1151 = vmul.f32 1.0, %v1150
        %v1152 = vrcp.pop %v1125
        %v1153 = vmul.f32 1.0, %v1152
        %v1154 = vmul.f32 %v1002, %v1127
        %v1155 = vmul.f32 %v1007, %v1129
        %v1156 = vmul.f32 %v1012, %v1131
        %v1157 = vmul.f32 %v1017, %v1133
        %v1158 = vmul.f32 %v1022, %v1135
        %v1159 = vmul.f32 %v1027, %v1137
        %v1160 = vmul.f32 %v1032, %v1139
        %v1161 = vmul.f32 %v1037, %v1141
        %v1162 = vmul.f32 %v1042, %v1143
        %v1163 = vmul.f32 %v1047, %v1145
        %v1164 = vmul.f32 %v1052, %v1147
        %v1165 = vmul.f32 %v1057, %v1149
        %v1166 = vmul.f32 %v1062, %v1151
        %v1167 = vmul.f32 %v1067, %v1153
        %v1182 = vcombine.high %v1154, %v1154
        %v1184 = vunpack.c.l.s4 1983009808
        %v1185 = vunpack.c.0.s8 %v1184
        %v1186 = vlaneseq
        %v1187 = vshrl.u32 %v1186, 7
        %v1188 = vsub.s32 %v1185, %v1187
        %v1189 = vrot.slane %v1154, %v1188
        %v1191 = vunpack.c.l.s4 1983009808
        %v1192 = vunpack.c.0.s8 %v1191
        %v1193 = vlaneseq
        %v1194 = vshrl.u32 %v1193, 7
        %v1195 = vsub.s32 %v1192, %v1194
        %v1196 = vrot.slane %v1182, %v1195
        %v1197 = vcombine.high %v1189, %v1189
        %v1198 = vcombine.high %v1196, %v1196
        %v1199 = vcombine.high %v1155, %v1155
        %v1201 = vunpack.c.l.s4 1983009808
        %v1202 = vunpack.c.0.s8 %v1201
        %v1203 = vlaneseq
        %v1204 = vshrl.u32 %v1203, 7
        %v1205 = vsub.s32 %v1202, %v1204
        %v1206 = vrot.slane %v1155, %v1205
        %v1208 = vunpack.c.l.s4 1983009808
        %v1209 = vunpack.c.0.s8 %v1208
        %v1210 = vlaneseq
        %v1211 = vshrl.u32 %v1210, 7
        %v1212 = vsub.s32 %v1209, %v1211
        %v1213 = vrot.slane %v1199, %v1212
        %v1214 = vcombine.high %v1206, %v1206
        %v1215 = vcombine.high %v1213, %v1213
        %v1216 = vcombine.high %v1156, %v1156
        %v1218 = vunpack.c.l.s4 1983009808
        %v1219 = vunpack.c.0.s8 %v1218
        %v1220 = vlaneseq
        %v1221 = vshrl.u32 %v1220, 7
        %v1222 = vsub.s32 %v1219, %v1221
        %v1223 = vrot.slane %v1156, %v1222
        %v1225 = vunpack.c.l.s4 1983009808
        %v1226 = vunpack.c.0.s8 %v1225
        %v1227 = vlaneseq
        %v1228 = vshrl.u32 %v1227, 7
        %v1229 = vsub.s32 %v1226, %v1228
        %v1230 = vrot.slane %v1216, %v1229
        %v1231 = vcombine.high %v1223, %v1223
        %v1232 = vcombine.high %v1230, %v1230
        %v1233 = vcombine.high %v1157, %v1157
        %v1235 = vunpack.c.l.s4 1983009808
        %v1236 = vunpack.c.0.s8 %v1235
        %v1237 = vlaneseq
        %v1238 = vshrl.u32 %v1237, 7
        %v1239 = vsub.s32 %v1236, %v1238
        %v1240 = vrot.slane %v1157, %v1239
        %v1242 = vunpack.c.l.s4 1983009808
        %v1243 = vunpack.c.0.s8 %v1242
        %v1244 = vlaneseq
        %v1245 = vshrl.u32 %v1244, 7
        %v1246 = vsub.s32 %v1243, %v1245
        %v1247 = vrot.slane %v1233, %v1246
        %v1248 = vcombine.high %v1240, %v1240
        %v1249 = vcombine.high %v1247, %v1247
        %v1250 = vcombine.high %v1158, %v1158
        %v1252 = vunpack.c.l.s4 1983009808
        %v1253 = vunpack.c.0.s8 %v1252
        %v1254 = vlaneseq
        %v1255 = vshrl.u32 %v1254, 7
        %v1256 = vsub.s32 %v1253, %v1255
        %v1257 = vrot.slane %v1158, %v1256
        %v1259 = vunpack.c.l.s4 1983009808
        %v1260 = vunpack.c.0.s8 %v1259
        %v1261 = vlaneseq
        %v1262 = vshrl.u32 %v1261, 7
        %v1263 = vsub.s32 %v1260, %v1262
        %v1264 = vrot.slane %v1250, %v1263
        %v1265 = vcombine.high %v1257, %v1257
        %v1266 = vcombine.high %v1264, %v1264
        %v1267 = vcombine.high %v1159, %v1159
        %v1269 = vunpack.c.l.s4 1983009808
        %v1270 = vunpack.c.0.s8 %v1269
        %v1271 = vlaneseq
        %v1272 = vshrl.u32 %v1271, 7
        %v1273 = vsub.s32 %v1270, %v1272
        %v1274 = vrot.slane %v1159, %v1273
        %v1276 = vunpack.c.l.s4 1983009808
        %v1277 = vunpack.c.0.s8 %v1276
        %v1278 = vlaneseq
        %v1279 = vshrl.u32 %v1278, 7
        %v1280 = vsub.s32 %v1277, %v1279
        %v1281 = vrot.slane %v1267, %v1280
        %v1282 = vcombine.high %v1274, %v1274
        %v1283 = vcombine.high %v1281, %v1281
        %v1284 = vcombine.high %v1160, %v1160
        %v1286 = vunpack.c.l.s4 1983009808
        %v1287 = vunpack.c.0.s8 %v1286
        %v1288 = vlaneseq
        %v1289 = vshrl.u32 %v1288, 7
        %v1290 = vsub.s32 %v1287, %v1289
        %v1291 = vrot.slane %v1160, %v1290
        %v1293 = vunpack.c.l.s4 1983009808
        %v1294 = vunpack.c.0.s8 %v1293
        %v1295 = vlaneseq
        %v1296 = vshrl.u32 %v1295, 7
        %v1297 = vsub.s32 %v1294, %v1296
        %v1298 = vrot.slane %v1284, %v1297
        %v1299 = vcombine.high %v1291, %v1291
        %v1300 = vcombine.high %v1298, %v1298
        %v1301 = vcombine.high %v1161, %v1161
        %v1303 = vunpack.c.l.s4 1983009808
        %v1304 = vunpack.c.0.s8 %v1303
        %v1305 = vlaneseq
        %v1306 = vshrl.u32 %v1305, 7
        %v1307 = vsub.s32 %v1304, %v1306
        %v1308 = vrot.slane %v1161, %v1307
        %v1310 = vunpack.c.l.s4 1983009808
        %v1311 = vunpack.c.0.s8 %v1310
        %v1312 = vlaneseq
        %v1313 = vshrl.u32 %v1312, 7
        %v1314 = vsub.s32 %v1311, %v1313
        %v1315 = vrot.slane %v1301, %v1314
        %v1316 = vcombine.high %v1308, %v1308
        %v1317 = vcombine.high %v1315, %v1315
        %v1318 = vcombine.high %v1162, %v1162
        %v1320 = vunpack.c.l.s4 1983009808
        %v1321 = vunpack.c.0.s8 %v1320
        %v1322 = vlaneseq
        %v1323 = vshrl.u32 %v1322, 7
        %v1324 = vsub.s32 %v1321, %v1323
        %v1325 = vrot.slane %v1162, %v1324
        %v1327 = vunpack.c.l.s4 1983009808
        %v1328 = vunpack.c.0.s8 %v1327
        %v1329 = vlaneseq
        %v1330 = vshrl.u32 %v1329, 7
        %v1331 = vsub.s32 %v1328, %v1330
        %v1332 = vrot.slane %v1318, %v1331
        %v1333 = vcombine.high %v1325, %v1325
        %v1334 = vcombine.high %v1332, %v1332
        %v1335 = vcombine.high %v1163, %v1163
        %v1337 = vunpack.c.l.s4 1983009808
        %v1338 = vunpack.c.0.s8 %v1337
        %v1339 = vlaneseq
        %v1340 = vshrl.u32 %v1339, 7
        %v1341 = vsub.s32 %v1338, %v1340
        %v1342 = vrot.slane %v1163, %v1341
        %v1344 = vunpack.c.l.s4 1983009808
        %v1345 = vunpack.c.0.s8 %v1344
        %v1346 = vlaneseq
        %v1347 = vshrl.u32 %v1346, 7
        %v1348 = vsub.s32 %v1345, %v1347
        %v1349 = vrot.slane %v1335, %v1348
        %v1350 = vcombine.high %v1342, %v1342
        %v1351 = vcombine.high %v1349, %v1349
        %v1352 = vcombine.high %v1164, %v1164
        %v1354 = vunpack.c.l.s4 1983009808
        %v1355 = vunpack.c.0.s8 %v1354
        %v1356 = vlaneseq
        %v1357 = vshrl.u32 %v1356, 7
        %v1358 = vsub.s32 %v1355, %v1357
        %v1359 = vrot.slane %v1164, %v1358
        %v1361 = vunpack.c.l.s4 1983009808
        %v1362 = vunpack.c.0.s8 %v1361
        %v1363 = vlaneseq
        %v1364 = vshrl.u32 %v1363, 7
        %v1365 = vsub.s32 %v1362, %v1364
        %v1366 = vrot.slane %v1352, %v1365
        %v1367 = vcombine.high %v1359, %v1359
        %v1368 = vcombine.high %v1366, %v1366
        %v1369 = vcombine.high %v1165, %v1165
        %v1371 = vunpack.c.l.s4 1983009808
        %v1372 = vunpack.c.0.s8 %v1371
        %v1373 = vlaneseq
        %v1374 = vshrl.u32 %v1373, 7
        %v1375 = vsub.s32 %v1372, %v1374
        %v1376 = vrot.slane %v1165, %v1375
        %v1378 = vunpack.c.l.s4 1983009808
        %v1379 = vunpack.c.0.s8 %v1378
        %v1380 = vlaneseq
        %v1381 = vshrl.u32 %v1380, 7
        %v1382 = vsub.s32 %v1379, %v1381
        %v1383 = vrot.slane %v1369, %v1382
        %v1384 = vcombine.high %v1376, %v1376
        %v1385 = vcombine.high %v1383, %v1383
        %v1386 = vcombine.high %v1166, %v1166
        %v1388 = vunpack.c.l.s4 1983009808
        %v1389 = vunpack.c.0.s8 %v1388
        %v1390 = vlaneseq
        %v1391 = vshrl.u32 %v1390, 7
        %v1392 = vsub.s32 %v1389, %v1391
        %v1393 = vrot.slane %v1166, %v1392
        %v1395 = vunpack.c.l.s4 1983009808
        %v1396 = vunpack.c.0.s8 %v1395
        %v1397 = vlaneseq
        %v1398 = vshrl.u32 %v1397, 7
        %v1399 = vsub.s32 %v1396, %v1398
        %v1400 = vrot.slane %v1386, %v1399
        %v1401 = vcombine.high %v1393, %v1393
        %v1402 = vcombine.high %v1400, %v1400
        %v1404 = vunpack.c.l.s4 1983009808
        %v1405 = vunpack.c.0.s8 %v1404
        %v1406 = vlaneseq
        %v1407 = vshrl.u32 %v1406, 7
        %v1408 = vsub.s32 %v1405, %v1407
        %v1409 = vrot.slane %v1167, %v1408
        %v1410 = vcombine.high %v1409, %v1409
        %v1411 = vstv %s383
        %v1412 = vadd.s32 %v1411, 1
        %v1413 = vadd.s32 %v1411, 2
        %v1414 = vadd.s32 %v1411, 3
        %v1415 = vadd.s32 %v1411, 4
        %v1416 = vadd.s32 %v1411, 5
        %v1417 = vlaneseq
        %v1418 = vshrl.u32 %v1417, 7
        %v1419 = vadd.s32 %v1418, 8
        %v1420 = vadd.s32 %v1418, 16
        %vm1421 = vcmp.ge.s32.totalorder %v1411, 1
        %vm1422 = vcmp.ge.s32.totalorder %v1412, 1
        %vm1423 = vcmp.ge.s32.totalorder %v1413, 1
        %vm1424 = vcmp.ge.s32.totalorder %v1414, 1
        %vm1425 = vcmp.ge.s32.totalorder %v1415, 1
        %vm1426 = vcmp.ge.s32.totalorder %v1416, 1
        %vm1427 = vcmp.lt.s32.totalorder %v1411, 17
        %vm1428 = vcmp.lt.s32.totalorder %v1412, 17
        %vm1429 = vcmp.lt.s32.totalorder %v1413, 17
        %vm1430 = vcmp.lt.s32.totalorder %v1414, 17
        %vm1431 = vcmp.lt.s32.totalorder %v1415, 17
        %vm1432 = vcmp.lt.s32.totalorder %v1416, 17
        %vm1433 = vmand %vm1421, %vm1427
        %vm1434 = vmand %vm1422, %vm1428
        %vm1435 = vmand %vm1423, %vm1429
        %vm1436 = vmand %vm1424, %vm1430
        %vm1437 = vmand %vm1425, %vm1431
        %vm1438 = vmand %vm1426, %vm1432
        %vm1439 = vcmp.ge.s32.totalorder %v1418, 1
        %vm1440 = vcmp.ge.s32.totalorder %v1419, 1
        %vm1441 = vcmp.ge.s32.totalorder %v1420, 1
        %vm1442 = vmand %vm1433, %vm1439
        %vm1443 = vmand %vm1433, %vm1440
        %vm1444 = vmand %vm1433, %vm1441
        %vm1445 = vmand %vm1434, %vm1439
        %vm1446 = vmand %vm1434, %vm1440
        %vm1447 = vmand %vm1434, %vm1441
        %vm1448 = vmand %vm1435, %vm1439
        %vm1449 = vmand %vm1435, %vm1440
        %vm1450 = vmand %vm1435, %vm1441
        %vm1451 = vmand %vm1436, %vm1439
        %vm1452 = vmand %vm1436, %vm1440
        %vm1453 = vmand %vm1436, %vm1441
        %vm1454 = vmand %vm1437, %vm1439
        %vm1455 = vmand %vm1437, %vm1440
        %vm1456 = vmand %vm1437, %vm1441
        %vm1457 = vmand %vm1438, %vm1439
        %vm1458 = vmand %vm1438, %vm1440
        %vm1459 = vmand %vm1438, %vm1441
        %vm1460 = vcmp.lt.s32.totalorder %v1418, 17
        %vm1461 = vcmp.lt.s32.totalorder %v1419, 17
        %vm1462 = vcmp.lt.s32.totalorder %v1420, 17
        %vm1463 = vmand %vm1442, %vm1460
        %vm1464 = vmand %vm1443, %vm1461
        %vm1465 = vmand %vm1444, %vm1462
        %vm1466 = vmand %vm1445, %vm1460
        %vm1467 = vmand %vm1446, %vm1461
        %vm1468 = vmand %vm1447, %vm1462
        %vm1469 = vmand %vm1448, %vm1460
        %vm1470 = vmand %vm1449, %vm1461
        %vm1471 = vmand %vm1450, %vm1462
        %vm1472 = vmand %vm1451, %vm1460
        %vm1473 = vmand %vm1452, %vm1461
        %vm1474 = vmand %vm1453, %vm1462
        %vm1475 = vmand %vm1454, %vm1460
        %vm1476 = vmand %vm1455, %vm1461
        %vm1477 = vmand %vm1456, %vm1462
        %vm1478 = vmand %vm1457, %vm1460
        %vm1479 = vmand %vm1458, %vm1461
        %vm1480 = vmand %vm1459, %vm1462
        %v1481 = vsel %vm1463, 1, 0
        %v1482 = vsel %vm1464, 1, 0
        %v1483 = vsel %vm1465, 1, 0
        %v1484 = vsel %vm1466, 1, 0
        %v1485 = vsel %vm1467, 1, 0
        %v1486 = vsel %vm1468, 1, 0
        %v1487 = vsel %vm1469, 1, 0
        %v1488 = vsel %vm1470, 1, 0
        %v1489 = vsel %vm1471, 1, 0
        %v1490 = vsel %vm1472, 1, 0
        %v1491 = vsel %vm1473, 1, 0
        %v1492 = vsel %vm1474, 1, 0
        %v1493 = vsel %vm1475, 1, 0
        %v1494 = vsel %vm1476, 1, 0
        %v1495 = vsel %vm1477, 1, 0
        %v1496 = vsel %vm1478, 1, 0
        %v1497 = vsel %vm1479, 1, 0
        %v1498 = vsel %vm1480, 1, 0
        %vm1499 = vcmp.eq.s32.totalorder %v1481, 1
        %vm1500 = vcmp.eq.s32.totalorder %v1482, 1
        %vm1501 = vcmp.eq.s32.totalorder %v1483, 1
        %vm1502 = vcmp.eq.s32.totalorder %v1484, 1
        %vm1503 = vcmp.eq.s32.totalorder %v1485, 1
        %vm1504 = vcmp.eq.s32.totalorder %v1486, 1
        %vm1505 = vcmp.eq.s32.totalorder %v1487, 1
        %vm1506 = vcmp.eq.s32.totalorder %v1488, 1
        %vm1507 = vcmp.eq.s32.totalorder %v1489, 1
        %vm1508 = vcmp.eq.s32.totalorder %v1490, 1
        %vm1509 = vcmp.eq.s32.totalorder %v1491, 1
        %vm1510 = vcmp.eq.s32.totalorder %v1492, 1
        %vm1511 = vcmp.eq.s32.totalorder %v1493, 1
        %vm1512 = vcmp.eq.s32.totalorder %v1494, 1
        %vm1513 = vcmp.eq.s32.totalorder %v1495, 1
        %vm1514 = vcmp.eq.s32.totalorder %v1496, 1
        %vm1515 = vcmp.eq.s32.totalorder %v1497, 1
        %vm1516 = vcmp.eq.s32.totalorder %v1498, 1
        %v1517 = vcombine.low %v1189, %v1197
        %v1518 = vcombine.low %v1196, %v1198
        %v1520 = vunpack.c.l.s4 1983009808
        %v1521 = vunpack.c.0.s8 %v1520
        %v1522 = vlaneseq
        %v1523 = vshrl.u32 %v1522, 7
        %v1524 = vsub.s32 %v1521, %v1523
        %v1525 = vrot.slane %v1517, %v1524
        %v1527 = vunpack.c.l.s4 1983009808
        %v1528 = vunpack.c.0.s8 %v1527
        %v1529 = vlaneseq
        %v1530 = vshrl.u32 %v1529, 7
        %v1531 = vsub.s32 %v1528, %v1530
        %v1532 = vrot.slane %v1518, %v1531
        %v1533 = vcombine.low %v1525, %v1532
        %v1534 = vcombine.low %v1206, %v1214
        %v1535 = vcombine.low %v1213, %v1215
        %v1537 = vunpack.c.l.s4 1983009808
        %v1538 = vunpack.c.0.s8 %v1537
        %v1539 = vlaneseq
        %v1540 = vshrl.u32 %v1539, 7
        %v1541 = vsub.s32 %v1538, %v1540
        %v1542 = vrot.slane %v1534, %v1541
        %v1544 = vunpack.c.l.s4 1983009808
        %v1545 = vunpack.c.0.s8 %v1544
        %v1546 = vlaneseq
        %v1547 = vshrl.u32 %v1546, 7
        %v1548 = vsub.s32 %v1545, %v1547
        %v1549 = vrot.slane %v1535, %v1548
        %v1550 = vcombine.low %v1542, %v1549
        %v1552 = vunpack.c.l.s4 1983009808
        %v1553 = vunpack.c.0.s8 %v1552
        %v1554 = vlaneseq
        %v1555 = vshrl.u32 %v1554, 7
        %v1556 = vsub.s32 %v1553, %v1555
        %v1557 = vrot.slane %v1223, %v1556
        %v1558 = vcombine.low %v1231, %v1230
        %v1559 = vcombine.low %v1232, %v1240
        %v1561 = vunpack.c.l.s4 1983009808
        %v1562 = vunpack.c.0.s8 %v1561
        %v1563 = vlaneseq
        %v1564 = vshrl.u32 %v1563, 7
        %v1565 = vsub.s32 %v1562, %v1564
        %v1566 = vrot.slane %v1558, %v1565
        %v1568 = vunpack.c.l.s4 1983009808
        %v1569 = vunpack.c.0.s8 %v1568
        %v1570 = vlaneseq
        %v1571 = vshrl.u32 %v1570, 7
        %v1572 = vsub.s32 %v1569, %v1571
        %v1573 = vrot.slane %v1559, %v1572
        %v1574 = vcombine.low %v1566, %v1573
        %v1575 = vcombine.low %v1248, %v1247
        %v1576 = vcombine.low %v1249, %v1257
        %v1578 = vunpack.c.l.s4 1983009808
        %v1579 = vunpack.c.0.s8 %v1578
        %v1580 = vlaneseq
        %v1581 = vshrl.u32 %v1580, 7
        %v1582 = vsub.s32 %v1579, %v1581
        %v1583 = vrot.slane %v1575, %v1582
        %v1585 = vunpack.c.l.s4 1983009808
        %v1586 = vunpack.c.0.s8 %v1585
        %v1587 = vlaneseq
        %v1588 = vshrl.u32 %v1587, 7
        %v1589 = vsub.s32 %v1586, %v1588
        %v1590 = vrot.slane %v1576, %v1589
        %v1591 = vcombine.low %v1583, %v1590
        %v1593 = vunpack.c.l.s4 1983009808
        %v1594 = vunpack.c.0.s8 %v1593
        %v1595 = vlaneseq
        %v1596 = vshrl.u32 %v1595, 7
        %v1597 = vsub.s32 %v1594, %v1596
        %v1598 = vrot.slane %v1265, %v1597
        %v1599 = vcombine.low %v1264, %v1266
        %v1600 = vcombine.low %v1274, %v1282
        %v1602 = vunpack.c.l.s4 1983009808
        %v1603 = vunpack.c.0.s8 %v1602
        %v1604 = vlaneseq
        %v1605 = vshrl.u32 %v1604, 7
        %v1606 = vsub.s32 %v1603, %v1605
        %v1607 = vrot.slane %v1599, %v1606
        %v1609 = vunpack.c.l.s4 1983009808
        %v1610 = vunpack.c.0.s8 %v1609
        %v1611 = vlaneseq
        %v1612 = vshrl.u32 %v1611, 7
        %v1613 = vsub.s32 %v1610, %v1612
        %v1614 = vrot.slane %v1600, %v1613
        %v1615 = vcombine.low %v1607, %v1614
        %v1616 = vcombine.low %v1281, %v1283
        %v1617 = vcombine.low %v1291, %v1299
        %v1619 = vunpack.c.l.s4 1983009808
        %v1620 = vunpack.c.0.s8 %v1619
        %v1621 = vlaneseq
        %v1622 = vshrl.u32 %v1621, 7
        %v1623 = vsub.s32 %v1620, %v1622
        %v1624 = vrot.slane %v1616, %v1623
        %v1626 = vunpack.c.l.s4 1983009808
        %v1627 = vunpack.c.0.s8 %v1626
        %v1628 = vlaneseq
        %v1629 = vshrl.u32 %v1628, 7
        %v1630 = vsub.s32 %v1627, %v1629
        %v1631 = vrot.slane %v1617, %v1630
        %v1632 = vcombine.low %v1624, %v1631
        %v1634 = vunpack.c.l.s4 1983009808
        %v1635 = vunpack.c.0.s8 %v1634
        %v1636 = vlaneseq
        %v1637 = vshrl.u32 %v1636, 7
        %v1638 = vsub.s32 %v1635, %v1637
        %v1639 = vrot.slane %v1298, %v1638
        %v1640 = vcombine.low %v1300, %v1308
        %v1641 = vcombine.low %v1316, %v1315
        %v1643 = vunpack.c.l.s4 1983009808
        %v1644 = vunpack.c.0.s8 %v1643
        %v1645 = vlaneseq
        %v1646 = vshrl.u32 %v1645, 7
        %v1647 = vsub.s32 %v1644, %v1646
        %v1648 = vrot.slane %v1640, %v1647
        %v1650 = vunpack.c.l.s4 1983009808
        %v1651 = vunpack.c.0.s8 %v1650
        %v1652 = vlaneseq
        %v1653 = vshrl.u32 %v1652, 7
        %v1654 = vsub.s32 %v1651, %v1653
        %v1655 = vrot.slane %v1641, %v1654
        %v1656 = vcombine.low %v1648, %v1655
        %v1657 = vcombine.low %v1317, %v1325
        %v1658 = vcombine.low %v1333, %v1332
        %v1660 = vunpack.c.l.s4 1983009808
        %v1661 = vunpack.c.0.s8 %v1660
        %v1662 = vlaneseq
        %v1663 = vshrl.u32 %v1662, 7
        %v1664 = vsub.s32 %v1661, %v1663
        %v1665 = vrot.slane %v1657, %v1664
        %v1667 = vunpack.c.l.s4 1983009808
        %v1668 = vunpack.c.0.s8 %v1667
        %v1669 = vlaneseq
        %v1670 = vshrl.u32 %v1669, 7
        %v1671 = vsub.s32 %v1668, %v1670
        %v1672 = vrot.slane %v1658, %v1671
        %v1673 = vcombine.low %v1665, %v1672
        %v1675 = vunpack.c.l.s4 1983009808
        %v1676 = vunpack.c.0.s8 %v1675
        %v1677 = vlaneseq
        %v1678 = vshrl.u32 %v1677, 7
        %v1679 = vsub.s32 %v1676, %v1678
        %v1680 = vrot.slane %v1334, %v1679
        %v1681 = vcombine.low %v1342, %v1350
        %v1682 = vcombine.low %v1349, %v1351
        %v1684 = vunpack.c.l.s4 1983009808
        %v1685 = vunpack.c.0.s8 %v1684
        %v1686 = vlaneseq
        %v1687 = vshrl.u32 %v1686, 7
        %v1688 = vsub.s32 %v1685, %v1687
        %v1689 = vrot.slane %v1681, %v1688
        %v1691 = vunpack.c.l.s4 1983009808
        %v1692 = vunpack.c.0.s8 %v1691
        %v1693 = vlaneseq
        %v1694 = vshrl.u32 %v1693, 7
        %v1695 = vsub.s32 %v1692, %v1694
        %v1696 = vrot.slane %v1682, %v1695
        %v1697 = vcombine.low %v1689, %v1696
        %v1698 = vcombine.low %v1359, %v1367
        %v1699 = vcombine.low %v1366, %v1368
        %v1701 = vunpack.c.l.s4 1983009808
        %v1702 = vunpack.c.0.s8 %v1701
        %v1703 = vlaneseq
        %v1704 = vshrl.u32 %v1703, 7
        %v1705 = vsub.s32 %v1702, %v1704
        %v1706 = vrot.slane %v1698, %v1705
        %v1708 = vunpack.c.l.s4 1983009808
        %v1709 = vunpack.c.0.s8 %v1708
        %v1710 = vlaneseq
        %v1711 = vshrl.u32 %v1710, 7
        %v1712 = vsub.s32 %v1709, %v1711
        %v1713 = vrot.slane %v1699, %v1712
        %v1714 = vcombine.low %v1706, %v1713
        %v1716 = vunpack.c.l.s4 1983009808
        %v1717 = vunpack.c.0.s8 %v1716
        %v1718 = vlaneseq
        %v1719 = vshrl.u32 %v1718, 7
        %v1720 = vsub.s32 %v1717, %v1719
        %v1721 = vrot.slane %v1376, %v1720
        %v1722 = vcombine.low %v1384, %v1383
        %v1723 = vcombine.low %v1385, %v1393
        %v1725 = vunpack.c.l.s4 1983009808
        %v1726 = vunpack.c.0.s8 %v1725
        %v1727 = vlaneseq
        %v1728 = vshrl.u32 %v1727, 7
        %v1729 = vsub.s32 %v1726, %v1728
        %v1730 = vrot.slane %v1722, %v1729
        %v1732 = vunpack.c.l.s4 1983009808
        %v1733 = vunpack.c.0.s8 %v1732
        %v1734 = vlaneseq
        %v1735 = vshrl.u32 %v1734, 7
        %v1736 = vsub.s32 %v1733, %v1735
        %v1737 = vrot.slane %v1723, %v1736
        %v1738 = vcombine.low %v1730, %v1737
        %v1739 = vcombine.low %v1401, %v1400
        %v1740 = vcombine.low %v1402, %v1409
        %v1742 = vunpack.c.l.s4 1983009808
        %v1743 = vunpack.c.0.s8 %v1742
        %v1744 = vlaneseq
        %v1745 = vshrl.u32 %v1744, 7
        %v1746 = vsub.s32 %v1743, %v1745
        %v1747 = vrot.slane %v1739, %v1746
        %v1749 = vunpack.c.l.s4 1983009808
        %v1750 = vunpack.c.0.s8 %v1749
        %v1751 = vlaneseq
        %v1752 = vshrl.u32 %v1751, 7
        %v1753 = vsub.s32 %v1750, %v1752
        %v1754 = vrot.slane %v1740, %v1753
        %v1755 = vcombine.low %v1747, %v1754
        %v1757 = vunpack.c.l.s4 1983009808
        %v1758 = vunpack.c.0.s8 %v1757
        %v1759 = vlaneseq
        %v1760 = vshrl.u32 %v1759, 7
        %v1761 = vsub.s32 %v1758, %v1760
        %v1762 = vrot.slane %v1410, %v1761
        %v1781 = vsel %vm1499, %v1533, 0.0
        %v1782 = vsel %vm1500, %v1550, 0.0
        %v1783 = vsel %vm1501, %v1557, 0.0
        %v1784 = vsel %vm1502, %v1574, 0.0
        %v1785 = vsel %vm1503, %v1591, 0.0
        %v1786 = vsel %vm1504, %v1598, 0.0
        %v1787 = vsel %vm1505, %v1615, 0.0
        %v1788 = vsel %vm1506, %v1632, 0.0
        %v1789 = vsel %vm1507, %v1639, 0.0
        %v1790 = vsel %vm1508, %v1656, 0.0
        %v1791 = vsel %vm1509, %v1673, 0.0
        %v1792 = vsel %vm1510, %v1680, 0.0
        %v1793 = vsel %vm1511, %v1697, 0.0
        %v1794 = vsel %vm1512, %v1714, 0.0
        %v1795 = vsel %vm1513, %v1721, 0.0
        %v1796 = vsel %vm1514, %v1738, 0.0
        %v1797 = vsel %vm1515, %v1755, 0.0
        %v1798 = vsel %vm1516, %v1762, 0.0
        %v1799 = vld [vmem:[%s3] sm:$0xff]
        %v1800 = vld [vmem:[%s3 + $0x8] sm:$0x1]
        %v1801 = vlaneseq
        %v1802 = vshrl.u32 %v1801, 7
        %v1803 = vsub.s32 0, %v1802
        %v1804 = vrot.slane %v1799, %v1803
        %v1805 = vmul.f32 %v1781, %v1804
        %v1806 = vmul.f32 %v1782, %v1804
        %v1807 = vmul.f32 %v1784, %v1804
        %v1808 = vmul.f32 %v1785, %v1804
        %v1809 = vmul.f32 %v1787, %v1804
        %v1810 = vmul.f32 %v1788, %v1804
        %v1811 = vmul.f32 %v1790, %v1804
        %v1812 = vmul.f32 %v1791, %v1804
        %v1813 = vadd.f32 %v1805, 0.0
        %v1814 = vadd.f32 %v1806, 0.0
        %v1815 = vadd.f32 %v1807, 0.0
        %v1816 = vadd.f32 %v1808, 0.0
        %v1817 = vadd.f32 %v1809, 0.0
        %v1818 = vadd.f32 %v1810, 0.0
        %v1819 = vadd.f32 %v1811, 0.0
        %v1820 = vadd.f32 %v1812, 0.0
        %v1821 = vlaneseq
        %v1822 = vshrl.u32 %v1821, 7
        %v1823 = vsub.s32 1, %v1822
        %v1824 = vrot.slane %v1799, %v1823
        %v1825 = vmul.f32 %v1781, %v1824
        %v1826 = vmul.f32 %v1782, %v1824
        %v1827 = vmul.f32 %v1783, %v1824
        %v1828 = vmul.f32 %v1784, %v1824
        %v1829 = vmul.f32 %v1785, %v1824
        %v1830 = vmul.f32 %v1786, %v1824
        %v1831 = vmul.f32 %v1787, %v1824
        %v1832 = vmul.f32 %v1788, %v1824
        %v1833 = vmul.f32 %v1789, %v1824
        %v1834 = vmul.f32 %v1790, %v1824
        %v1835 = vmul.f32 %v1791, %v1824
        %v1836 = vmul.f32 %v1792, %v1824
        %vm1849 = vcmask 1046528
        %v1850 = vrot.slane %v1825, 1
        %v1851 = vrot.slane %v1826, 1
        %v1852 = vsel %vm1849, %v1850, %v1851
        %v1853 = vrot.slane %v1827, 1
        %v1854 = vsel %vm1849, %v1851, %v1853
        %v1855 = vrot.slane %v1828, 1
        %v1856 = vrot.slane %v1829, 1
        %v1857 = vsel %vm1849, %v1855, %v1856
        %v1858 = vrot.slane %v1830, 1
        %v1859 = vsel %vm1849, %v1856, %v1858
        %v1860 = vrot.slane %v1831, 1
        %v1861 = vrot.slane %v1832, 1
        %v1862 = vsel %vm1849, %v1860, %v1861
        %v1863 = vrot.slane %v1833, 1
        %v1864 = vsel %vm1849, %v1861, %v1863
        %v1865 = vrot.slane %v1834, 1
        %v1866 = vrot.slane %v1835, 1
        %v1867 = vsel %vm1849, %v1865, %v1866
        %v1868 = vrot.slane %v1836, 1
        %v1869 = vsel %vm1849, %v1866, %v1868
        %v1878 = vadd.f32 %v1813, %v1852
        %v1879 = vadd.f32 %v1814, %v1854
        %v1880 = vadd.f32 %v1815, %v1857
        %v1881 = vadd.f32 %v1816, %v1859
        %v1882 = vadd.f32 %v1817, %v1862
        %v1883 = vadd.f32 %v1818, %v1864
        %v1884 = vadd.f32 %v1819, %v1867
        %v1885 = vadd.f32 %v1820, %v1869
        %v1886 = vlaneseq
        %v1887 = vshrl.u32 %v1886, 7
        %v1888 = vsub.s32 2, %v1887
        %v1889 = vrot.slane %v1799, %v1888
        %v1890 = vmul.f32 %v1781, %v1889
        %v1891 = vmul.f32 %v1782, %v1889
        %v1892 = vmul.f32 %v1783, %v1889
        %v1893 = vmul.f32 %v1784, %v1889
        %v1894 = vmul.f32 %v1785, %v1889
        %v1895 = vmul.f32 %v1786, %v1889
        %v1896 = vmul.f32 %v1787, %v1889
        %v1897 = vmul.f32 %v1788, %v1889
        %v1898 = vmul.f32 %v1789, %v1889
        %v1899 = vmul.f32 %v1790, %v1889
        %v1900 = vmul.f32 %v1791, %v1889
        %v1901 = vmul.f32 %v1792, %v1889
        %vm1914 = vcmask 1045504
        %v1915 = vrot.slane %v1890, 2
        %v1916 = vrot.slane %v1891, 2
        %v1917 = vsel %vm1914, %v1915, %v1916
        %v1918 = vrot.slane %v1892, 2
        %v1919 = vsel %vm1914, %v1916, %v1918
        %v1920 = vrot.slane %v1893, 2
        %v1921 = vrot.slane %v1894, 2
        %v1922 = vsel %vm1914, %v1920, %v1921
        %v1923 = vrot.slane %v1895, 2
        %v1924 = vsel %vm1914, %v1921, %v1923
        %v1925 = vrot.slane %v1896, 2
        %v1926 = vrot.slane %v1897, 2
        %v1927 = vsel %vm1914, %v1925, %v1926
        %v1928 = vrot.slane %v1898, 2
        %v1929 = vsel %vm1914, %v1926, %v1928
        %v1930 = vrot.slane %v1899, 2
        %v1931 = vrot.slane %v1900, 2
        %v1932 = vsel %vm1914, %v1930, %v1931
        %v1933 = vrot.slane %v1901, 2
        %v1934 = vsel %vm1914, %v1931, %v1933
        %v1943 = vadd.f32 %v1878, %v1917
        %v1944 = vadd.f32 %v1879, %v1919
        %v1945 = vadd.f32 %v1880, %v1922
        %v1946 = vadd.f32 %v1881, %v1924
        %v1947 = vadd.f32 %v1882, %v1927
        %v1948 = vadd.f32 %v1883, %v1929
        %v1949 = vadd.f32 %v1884, %v1932
        %v1950 = vadd.f32 %v1885, %v1934
        %v1951 = vlaneseq
        %v1952 = vshrl.u32 %v1951, 7
        %v1953 = vsub.s32 3, %v1952
        %v1954 = vrot.slane %v1799, %v1953
        %v1955 = vmul.f32 %v1784, %v1954
        %v1956 = vmul.f32 %v1785, %v1954
        %v1957 = vmul.f32 %v1787, %v1954
        %v1958 = vmul.f32 %v1788, %v1954
        %v1959 = vmul.f32 %v1790, %v1954
        %v1960 = vmul.f32 %v1791, %v1954
        %v1961 = vmul.f32 %v1793, %v1954
        %v1962 = vmul.f32 %v1794, %v1954
        %v1963 = vadd.f32 %v1943, %v1955
        %v1964 = vadd.f32 %v1944, %v1956
        %v1965 = vadd.f32 %v1945, %v1957
        %v1966 = vadd.f32 %v1946, %v1958
        %v1967 = vadd.f32 %v1947, %v1959
        %v1968 = vadd.f32 %v1948, %v1960
        %v1969 = vadd.f32 %v1949, %v1961
        %v1970 = vadd.f32 %v1950, %v1962
        %v1971 = vlaneseq
        %v1972 = vshrl.u32 %v1971, 7
        %v1973 = vsub.s32 4, %v1972
        %v1974 = vrot.slane %v1799, %v1973
        %v1975 = vmul.f32 %v1784, %v1974
        %v1976 = vmul.f32 %v1785, %v1974
        %v1977 = vmul.f32 %v1786, %v1974
        %v1978 = vmul.f32 %v1787, %v1974
        %v1979 = vmul.f32 %v1788, %v1974
        %v1980 = vmul.f32 %v1789, %v1974
        %v1981 = vmul.f32 %v1790, %v1974
        %v1982 = vmul.f32 %v1791, %v1974
        %v1983 = vmul.f32 %v1792, %v1974
        %v1984 = vmul.f32 %v1793, %v1974
        %v1985 = vmul.f32 %v1794, %v1974
        %v1986 = vmul.f32 %v1795, %v1974
        %v1999 = vrot.slane %v1975, 1
        %v2000 = vrot.slane %v1976, 1
        %v2001 = vsel %vm1849, %v1999, %v2000
        %v2002 = vrot.slane %v1977, 1
        %v2003 = vsel %vm1849, %v2000, %v2002
        %v2004 = vrot.slane %v1978, 1
        %v2005 = vrot.slane %v1979, 1
        %v2006 = vsel %vm1849, %v2004, %v2005
        %v2007 = vrot.slane %v1980, 1
        %v2008 = vsel %vm1849, %v2005, %v2007
        %v2009 = vrot.slane %v1981, 1
        %v2010 = vrot.slane %v1982, 1
        %v2011 = vsel %vm1849, %v2009, %v2010
        %v2012 = vrot.slane %v1983, 1
        %v2013 = vsel %vm1849, %v2010, %v2012
        %v2014 = vrot.slane %v1984, 1
        %v2015 = vrot.slane %v1985, 1
        %v2016 = vsel %vm1849, %v2014, %v2015
        %v2017 = vrot.slane %v1986, 1
        %v2018 = vsel %vm1849, %v2015, %v2017
        %v2027 = vadd.f32 %v1963, %v2001
        %v2028 = vadd.f32 %v1964, %v2003
        %v2029 = vadd.f32 %v1965, %v2006
        %v2030 = vadd.f32 %v1966, %v2008
        %v2031 = vadd.f32 %v1967, %v2011
        %v2032 = vadd.f32 %v1968, %v2013
        %v2033 = vadd.f32 %v1969, %v2016
        %v2034 = vadd.f32 %v1970, %v2018
        %v2035 = vlaneseq
        %v2036 = vshrl.u32 %v2035, 7
        %v2037 = vsub.s32 5, %v2036
        %v2038 = vrot.slane %v1799, %v2037
        %v2039 = vmul.f32 %v1784, %v2038
        %v2040 = vmul.f32 %v1785, %v2038
        %v2041 = vmul.f32 %v1786, %v2038
        %v2042 = vmul.f32 %v1787, %v2038
        %v2043 = vmul.f32 %v1788, %v2038
        %v2044 = vmul.f32 %v1789, %v2038
        %v2045 = vmul.f32 %v1790, %v2038
        %v2046 = vmul.f32 %v1791, %v2038
        %v2047 = vmul.f32 %v1792, %v2038
        %v2048 = vmul.f32 %v1793, %v2038
        %v2049 = vmul.f32 %v1794, %v2038
        %v2050 = vmul.f32 %v1795, %v2038
        %v2063 = vrot.slane %v2039, 2
        %v2064 = vrot.slane %v2040, 2
        %v2065 = vsel %vm1914, %v2063, %v2064
        %v2066 = vrot.slane %v2041, 2
        %v2067 = vsel %vm1914, %v2064, %v2066
        %v2068 = vrot.slane %v2042, 2
        %v2069 = vrot.slane %v2043, 2
        %v2070 = vsel %vm1914, %v2068, %v2069
        %v2071 = vrot.slane %v2044, 2
        %v2072 = vsel %vm1914, %v2069, %v2071
        %v2073 = vrot.slane %v2045, 2
        %v2074 = vrot.slane %v2046, 2
        %v2075 = vsel %vm1914, %v2073, %v2074
        %v2076 = vrot.slane %v2047, 2
        %v2077 = vsel %vm1914, %v2074, %v2076
        %v2078 = vrot.slane %v2048, 2
        %v2079 = vrot.slane %v2049, 2
        %v2080 = vsel %vm1914, %v2078, %v2079
        %v2081 = vrot.slane %v2050, 2
        %v2082 = vsel %vm1914, %v2079, %v2081
        %v2091 = vadd.f32 %v2027, %v2065
        %v2092 = vadd.f32 %v2028, %v2067
        %v2093 = vadd.f32 %v2029, %v2070
        %v2094 = vadd.f32 %v2030, %v2072
        %v2095 = vadd.f32 %v2031, %v2075
        %v2096 = vadd.f32 %v2032, %v2077
        %v2097 = vadd.f32 %v2033, %v2080
        %v2098 = vadd.f32 %v2034, %v2082
        %v2099 = vlaneseq
        %v2100 = vshrl.u32 %v2099, 7
        %v2101 = vsub.s32 6, %v2100
        %v2102 = vrot.slane %v1799, %v2101
        %v2103 = vmul.f32 %v1787, %v2102
        %v2104 = vmul.f32 %v1788, %v2102
        %v2105 = vmul.f32 %v1790, %v2102
        %v2106 = vmul.f32 %v1791, %v2102
        %v2107 = vmul.f32 %v1793, %v2102
        %v2108 = vmul.f32 %v1794, %v2102
        %v2109 = vmul.f32 %v1796, %v2102
        %v2110 = vmul.f32 %v1797, %v2102
        %v2111 = vadd.f32 %v2091, %v2103
        %v2112 = vadd.f32 %v2092, %v2104
        %v2113 = vadd.f32 %v2093, %v2105
        %v2114 = vadd.f32 %v2094, %v2106
        %v2115 = vadd.f32 %v2095, %v2107
        %v2116 = vadd.f32 %v2096, %v2108
        %v2117 = vadd.f32 %v2097, %v2109
        %v2118 = vadd.f32 %v2098, %v2110
        %v2119 = vlaneseq
        %v2120 = vshrl.u32 %v2119, 7
        %v2121 = vsub.s32 7, %v2120
        %v2122 = vrot.slane %v1799, %v2121
        %v2123 = vmul.f32 %v1787, %v2122
        %v2124 = vmul.f32 %v1788, %v2122
        %v2125 = vmul.f32 %v1789, %v2122
        %v2126 = vmul.f32 %v1790, %v2122
        %v2127 = vmul.f32 %v1791, %v2122
        %v2128 = vmul.f32 %v1792, %v2122
        %v2129 = vmul.f32 %v1793, %v2122
        %v2130 = vmul.f32 %v1794, %v2122
        %v2131 = vmul.f32 %v1795, %v2122
        %v2132 = vmul.f32 %v1796, %v2122
        %v2133 = vmul.f32 %v1797, %v2122
        %v2134 = vmul.f32 %v1798, %v2122
        %v2147 = vrot.slane %v2123, 1
        %v2148 = vrot.slane %v2124, 1
        %v2149 = vsel %vm1849, %v2147, %v2148
        %v2150 = vrot.slane %v2125, 1
        %v2151 = vsel %vm1849, %v2148, %v2150
        %v2152 = vrot.slane %v2126, 1
        %v2153 = vrot.slane %v2127, 1
        %v2154 = vsel %vm1849, %v2152, %v2153
        %v2155 = vrot.slane %v2128, 1
        %v2156 = vsel %vm1849, %v2153, %v2155
        %v2157 = vrot.slane %v2129, 1
        %v2158 = vrot.slane %v2130, 1
        %v2159 = vsel %vm1849, %v2157, %v2158
        %v2160 = vrot.slane %v2131, 1
        %v2161 = vsel %vm1849, %v2158, %v2160
        %v2162 = vrot.slane %v2132, 1
        %v2163 = vrot.slane %v2133, 1
        %v2164 = vsel %vm1849, %v2162, %v2163
        %v2165 = vrot.slane %v2134, 1
        %v2166 = vsel %vm1849, %v2163, %v2165
        %v2175 = vadd.f32 %v2111, %v2149
        %v2176 = vadd.f32 %v2112, %v2151
        %v2177 = vadd.f32 %v2113, %v2154
        %v2178 = vadd.f32 %v2114, %v2156
        %v2179 = vadd.f32 %v2115, %v2159
        %v2180 = vadd.f32 %v2116, %v2161
        %v2181 = vadd.f32 %v2117, %v2164
        %v2182 = vadd.f32 %v2118, %v2166
        %v2183 = vlaneseq
        %v2184 = vshrl.u32 %v2183, 7
        %v2185 = vsub.s32 0, %v2184
        %v2186 = vrot.slane %v1800, %v2185
        %v2187 = vmul.f32 %v1787, %v2186
        %v2188 = vmul.f32 %v1788, %v2186
        %v2189 = vmul.f32 %v1789, %v2186
        %v2190 = vmul.f32 %v1790, %v2186
        %v2191 = vmul.f32 %v1791, %v2186
        %v2192 = vmul.f32 %v1792, %v2186
        %v2193 = vmul.f32 %v1793, %v2186
        %v2194 = vmul.f32 %v1794, %v2186
        %v2195 = vmul.f32 %v1795, %v2186
        %v2196 = vmul.f32 %v1796, %v2186
        %v2197 = vmul.f32 %v1797, %v2186
        %v2198 = vmul.f32 %v1798, %v2186
        %v2211 = vrot.slane %v2187, 2
        %v2212 = vrot.slane %v2188, 2
        %v2213 = vsel %vm1914, %v2211, %v2212
        %v2214 = vrot.slane %v2189, 2
        %v2215 = vsel %vm1914, %v2212, %v2214
        %v2216 = vrot.slane %v2190, 2
        %v2217 = vrot.slane %v2191, 2
        %v2218 = vsel %vm1914, %v2216, %v2217
        %v2219 = vrot.slane %v2192, 2
        %v2220 = vsel %vm1914, %v2217, %v2219
        %v2221 = vrot.slane %v2193, 2
        %v2222 = vrot.slane %v2194, 2
        %v2223 = vsel %vm1914, %v2221, %v2222
        %v2224 = vrot.slane %v2195, 2
        %v2225 = vsel %vm1914, %v2222, %v2224
        %v2226 = vrot.slane %v2196, 2
        %v2227 = vrot.slane %v2197, 2
        %v2228 = vsel %vm1914, %v2226, %v2227
        %v2229 = vrot.slane %v2198, 2
        %v2230 = vsel %vm1914, %v2227, %v2229
        %v2239 = vadd.f32 %v2175, %v2213
        %v2240 = vadd.f32 %v2176, %v2215
        %v2241 = vadd.f32 %v2177, %v2218
        %v2242 = vadd.f32 %v2178, %v2220
        %v2243 = vadd.f32 %v2179, %v2223
        %v2244 = vadd.f32 %v2180, %v2225
        %v2245 = vadd.f32 %v2181, %v2228
        %v2246 = vadd.f32 %v2182, %v2230
        %v2247 = vld [vmem:[%s4] sm:$0x1]
        %v2249 = vlaneseq
        %v2250 = vshrl.u32 %v2249, 7
        %v2251 = vsub.s32 0, %v2250
        %v2252 = vrot.slane %v2247, %v2251
        %v2254 = vadd.f32 %v2239, %v2252
        %v2255 = vadd.f32 %v2240, %v2252
        %v2256 = vadd.f32 %v2241, %v2252
        %v2257 = vadd.f32 %v2242, %v2252
        %v2258 = vadd.f32 %v2243, %v2252
        %v2259 = vadd.f32 %v2244, %v2252
        %v2260 = vadd.f32 %v2245, %v2252
        %v2261 = vadd.f32 %v2246, %v2252
        %v2262 = vxor.u32 %v2254, 2147483648
        %v2263 = vxor.u32 %v2255, 2147483648
        %v2264 = vxor.u32 %v2256, 2147483648
        %v2265 = vxor.u32 %v2257, 2147483648
        %v2266 = vxor.u32 %v2258, 2147483648
        %v2267 = vxor.u32 %v2259, 2147483648
        %v2268 = vxor.u32 %v2260, 2147483648
        %v2269 = vxor.u32 %v2261, 2147483648
        %v2270 = vmul.f32 %v2262, 1.442695
        %v2271 = vpow.pop %v2270
        %v2272 = vmul.f32 %v2263, 1.442695
        %v2273 = vpow.pop %v2272
        %v2274 = vmul.f32 %v2264, 1.442695
        %v2275 = vpow.pop %v2274
        %v2276 = vmul.f32 %v2265, 1.442695
        %v2277 = vpow.pop %v2276
        %v2278 = vmul.f32 %v2266, 1.442695
        %v2279 = vpow.pop %v2278
        %v2280 = vmul.f32 %v2267, 1.442695
        %v2281 = vpow.pop %v2280
        %v2282 = vmul.f32 %v2268, 1.442695
        %v2283 = vpow.pop %v2282
        %v2284 = vmul.f32 %v2269, 1.442695
        %v2285 = vpow.pop %v2284
        %v2286 = vadd.f32 %v2271, 1.0
        %v2287 = vadd.f32 %v2273, 1.0
        %v2288 = vadd.f32 %v2275, 1.0
        %v2289 = vadd.f32 %v2277, 1.0
        %v2290 = vadd.f32 %v2279, 1.0
        %v2291 = vadd.f32 %v2281, 1.0
        %v2292 = vadd.f32 %v2283, 1.0
        %v2293 = vadd.f32 %v2285, 1.0
        %v2294 = vrcp.pop %v2286
        %v2295 = vmul.f32 1.0, %v2294
        %v2296 = vrcp.pop %v2287
        %v2297 = vmul.f32 1.0, %v2296
        %v2298 = vrcp.pop %v2288
        %v2299 = vmul.f32 1.0, %v2298
        %v2300 = vrcp.pop %v2289
        %v2301 = vmul.f32 1.0, %v2300
        %v2302 = vrcp.pop %v2290
        %v2303 = vmul.f32 1.0, %v2302
        %v2304 = vrcp.pop %v2291
        %v2305 = vmul.f32 1.0, %v2304
        %v2306 = vrcp.pop %v2292
        %v2307 = vmul.f32 1.0, %v2306
        %v2308 = vrcp.pop %v2293
        %v2309 = vmul.f32 1.0, %v2308
        %v2310 = vmul.f32 %v2254, %v2295
        %v2311 = vmul.f32 %v2255, %v2297
        %v2312 = vmul.f32 %v2256, %v2299
        %v2313 = vmul.f32 %v2257, %v2301
        %v2314 = vmul.f32 %v2258, %v2303
        %v2315 = vmul.f32 %v2259, %v2305
        %v2316 = vmul.f32 %v2260, %v2307
        %v2317 = vmul.f32 %v2261, %v2309
        %vm2318 = vcmask 785408
        %2319 = vst.msk [vmem:[%s370] sm:$0xff] %vm2318, %v2310
        %2320 = vst.msk [vmem:[%s370 + $0x8] sm:$0xff] %vm2318, %v2311
        %2321 = vst.msk [vmem:[%s370 + $0x10] sm:$0xff] %vm2318, %v2312
        %2322 = vst.msk [vmem:[%s370 + $0x18] sm:$0xff] %vm2318, %v2313
        %2323 = vst.msk [vmem:[%s370 + $0x20] sm:$0xff] %vm2318, %v2314
        %2324 = vst.msk [vmem:[%s370 + $0x28] sm:$0xff] %vm2318, %v2315
        %2325 = vst.msk [vmem:[%s370 + $0x30] sm:$0xff] %vm2318, %v2316
        %2326 = vst.msk [vmem:[%s370 + $0x38] sm:$0xff] %vm2318, %v2317
        %p2327 = scmp.eq.s32.totalorder %s33, 0
        // Predicated region
        $region57: #{tpu_custom_call.1} parent=55 // pred_check
          %p2328 = pneg %p2327
        $region58: #{tpu_custom_call.1} parent=55 // pred_check_branch
          %2330 = sbr.rel (%p2328) target = $region60
        $region59: #{tpu_custom_call.1} parent=55 // pred_region
          %vm2331 = vcmask 778240
          %2332 = vst.msk [vmem:[#allocation2] sm:$0x1] %vm2331, 0.0
        $region60: #{tpu_custom_call.1} parent=55 // pred_fallthru
          _
        %v2333 = vld [vmem:[#allocation2] sm:$0x1]
        %v2334 = vsel %vm2318, %v2310, 0.0
        %v2335 = vsel %vm2318, %v2311, 0.0
        %v2336 = vadd.f32 %v2334, %v2335
        %v2337 = vsel %vm2318, %v2312, 0.0
        %v2338 = vadd.f32 %v2336, %v2337
        %v2339 = vsel %vm2318, %v2313, 0.0
        %v2340 = vadd.f32 %v2338, %v2339
        %v2341 = vsel %vm2318, %v2314, 0.0
        %v2342 = vadd.f32 %v2340, %v2341
        %v2343 = vsel %vm2318, %v2315, 0.0
        %v2344 = vadd.f32 %v2342, %v2343
        %v2345 = vsel %vm2318, %v2316, 0.0
        %v2346 = vadd.f32 %v2344, %v2345
        %v2347 = vsel %vm2318, %v2317, 0.0
        %v2348 = vadd.f32 %v2346, %v2347
        %v2349 = vrot.slane %v2348, 4
        %v2350 = vadd.f32 %v2348, %v2349
        %v2351 = vrot.slane %v2350, 2
        %v2352 = vadd.f32 %v2350, %v2351
        %v2353 = vrot.slane %v2352, 1
        %v2354 = vadd.f32 %v2352, %v2353
        %v2355 = vadd.f32 %v2333, %v2354
        %vm2356 = vcmask 778240
        %2357 = vst.msk [vmem:[#allocation2] sm:$0x1] %vm2356, %v2355
        %p2358 = scmp.eq.s32.totalorder %s33, 3
        // Predicated region
        $region61: #{tpu_custom_call.1} parent=55 // pred_check
          %p2359 = pneg %p2358
        $region62: #{tpu_custom_call.1} parent=55 // pred_check_branch
          %2361 = sbr.rel (%p2359) target = $region64
        $region63: #{tpu_custom_call.1} parent=55 // pred_region
          %v2362 = vld [vmem:[#allocation2] sm:$0x1]
          %v2363 = vmul.f32 %v2362, 0.00390625
          %v2364 = vld [vmem:[%s5] sm:$0xff]
          %v2365 = vld [vmem:[%s5 + $0x8] sm:$0xff]
          %v2366 = vld [vmem:[%s5 + $0x10] sm:$0xff]
          %v2367 = vld [vmem:[%s5 + $0x18] sm:$0xff]
          %v2368 = vld [vmem:[%s5 + $0x20] sm:$0xff]
          %v2369 = vld [vmem:[%s5 + $0x28] sm:$0xff]
          %v2370 = vld [vmem:[%s5 + $0x30] sm:$0xff]
          %v2371 = vld [vmem:[%s5 + $0x38] sm:$0xff]
          %v2372 = vld [vmem:[%s5 + $0x40] sm:$0xff]
          %v2373 = vld [vmem:[%s5 + $0x48] sm:$0xff]
          %v2374 = vld [vmem:[%s5 + $0x50] sm:$0xff]
          %v2375 = vld [vmem:[%s5 + $0x58] sm:$0xff]
          %v2376 = vld [vmem:[%s6] sm:$0x1]
          %v2378 = vsel %vm2318, %v2363, 0
          %2380 = vmatprep.subr.mxu0 0.0
          %2381 = vmatpush1.msra.mxu0 %v2364
          %2382 = vmatprep.subr.mxu0 0.0
          %2383 = vmatpush1.msra.mxu0 %v2365
          %2384 = vmatprep.subr.mxu0 0.0
          %2385 = vmatpush1.msra.mxu0 %v2366
          %2386 = vmatprep.subr.mxu0 0.0
          %2387 = vmatpush1.msra.mxu0 %v2367
          %2388 = vmatprep.subr.mxu0 0.0
          %2389 = vmatpush1.msra.mxu0 %v2368
          %2390 = vmatprep.subr.mxu0 0.0
          %2391 = vmatpush1.msra.mxu0 %v2369
          %2392 = vmatprep.subr.mxu0 0.0
          %2393 = vmatpush1.msra.mxu0 %v2370
          %2394 = vmatprep.subr.mxu0 0.0
          %2395 = vmatpush1.msra.mxu0 %v2371
          %2396 = vmatprep.subr.mxu0 0.0
          %2397 = vmatpush1.msra.mxu0 %v2372
          %2398 = vmatprep.subr.mxu0 0.0
          %2399 = vmatpush1.msra.mxu0 %v2373
          %2400 = vmatprep.subr.mxu0 0.0
          %2401 = vmatpush1.msra.mxu0 %v2374
          %2402 = vmatprep.subr.mxu0 0.0
          %2403 = vmatpush1.msra.mxu0 %v2375
          %2404 = vmatprep.subr.mxu0 0.0
          %2405 = vmatpush1.msra.mxu0 0.0
          %2406 = vmatprep.subr.mxu0 0.0
          %2407 = vmatpush1.msra.mxu0 0.0
          %2408 = vmatprep.subr.mxu0 0.0
          %2409 = vmatpush1.msra.mxu0 0.0
          %2410 = vmatprep.subr.mxu0 0.0
          %2411 = vmatpush1.msra.mxu0 0.0
          %2412 = vmatprep.subr.mxu0 0.0
          %2413 = vmatpush1.msra.mxu0 0.0
          %2414 = vmatprep.subr.mxu0 0.0
          %2415 = vmatpush1.msra.mxu0 0.0
          %2416 = vmatprep.subr.mxu0 0.0
          %2417 = vmatpush1.msra.mxu0 0.0
          %2418 = vmatprep.subr.mxu0 0.0
          %2419 = vmatpush1.msra.mxu0 0.0
          %2420 = vmatprep.subr.mxu0 0.0
          %2421 = vmatpush1.msra.mxu0 0.0
          %2422 = vmatprep.subr.mxu0 0.0
          %2423 = vmatpush1.msra.mxu0 0.0
          %2424 = vmatprep.subr.mxu0 0.0
          %2425 = vmatpush1.msra.mxu0 0.0
          %2426 = vmatprep.subr.mxu0 0.0
          %2427 = vmatpush1.msra.mxu0 0.0
          %2428 = vmatprep.subr.mxu0 0.0
          %2429 = vmatpush1.msra.mxu0 0.0
          %2430 = vmatprep.subr.mxu0 0.0
          %2431 = vmatpush1.msra.mxu0 0.0
          %2432 = vmatprep.subr.mxu0 0.0
          %2433 = vmatpush1.msra.mxu0 0.0
          %2434 = vmatprep.subr.mxu0 0.0
          %2435 = vmatpush1.msra.mxu0 0.0
          %2436 = vmatprep.subr.mxu0 0.0
          %2437 = vmatpush1.msra.mxu0 0.0
          %2438 = vmatprep.subr.mxu0 0.0
          %2439 = vmatpush1.msra.mxu0 0.0
          %2440 = vmatprep.subr.mxu0 0.0
          %2441 = vmatpush1.msra.mxu0 0.0
          %2442 = vmatprep.subr.mxu0 0.0
          %2443 = vmatpush1.msra.mxu0 0.0
          %2444 = vmatprep.mubr.f32.mxu0 0.0
          %2445 = vmatmul.mubr.f32.gmra.mrb[0].mxu0 %v2378
          %v2446 = vpop.f32.mrb[0].mxu0
          %v2447 = vadd.f32 %v2376, %v2446
          %v2448 = vpop.f32.mrb[0].mxu0
          %2449 = vdwg.mxu0
          %v2450 = vxor.u32 %v2447, 2147483648
          %v2451 = vmul.f32 %v2450, 1.442695
          %v2452 = vpow.pop %v2451
          %v2453 = vadd.f32 %v2452, 1.0
          %v2454 = vrcp.pop %v2453
          %v2455 = vmul.f32 1.0, %v2454
          %v2456 = vmul.f32 %v2447, %v2455
          %v2457 = vld [vmem:[%s7] sm:$0xf]
          %v2458 = vld [vmem:[%s8] sm:$0x1]
          %vm2459 = vcmask 31744
          %v2461 = vsel %vm2459, %v2456, 0
          %vm2463 = vcmask 1043456
          %v2465 = vsel %vm2463, %v2457, 0
          %2467 = vmatprep.subr.mxu0 0.0
          %2468 = vmatpush1.msra.mxu0 %v2465
          %2469 = vmatprep.subr.mxu0 0.0
          %2470 = vmatpush1.msra.mxu0 0.0
          %2471 = vmatprep.subr.mxu0 0.0
          %2472 = vmatpush1.msra.mxu0 0.0
          %2473 = vmatprep.subr.mxu0 0.0
          %2474 = vmatpush1.msra.mxu0 0.0
          %2475 = vmatprep.subr.mxu0 0.0
          %2476 = vmatpush1.msra.mxu0 0.0
          %2477 = vmatprep.subr.mxu0 0.0
          %2478 = vmatpush1.msra.mxu0 0.0
          %2479 = vmatprep.subr.mxu0 0.0
          %2480 = vmatpush1.msra.mxu0 0.0
          %2481 = vmatprep.subr.mxu0 0.0
          %2482 = vmatpush1.msra.mxu0 0.0
          %2483 = vmatprep.subr.mxu0 0.0
          %2484 = vmatpush1.msra.mxu0 0.0
          %2485 = vmatprep.subr.mxu0 0.0
          %2486 = vmatpush1.msra.mxu0 0.0
          %2487 = vmatprep.subr.mxu0 0.0
          %2488 = vmatpush1.msra.mxu0 0.0
          %2489 = vmatprep.subr.mxu0 0.0
          %2490 = vmatpush1.msra.mxu0 0.0
          %2491 = vmatprep.subr.mxu0 0.0
          %2492 = vmatpush1.msra.mxu0 0.0
          %2493 = vmatprep.subr.mxu0 0.0
          %2494 = vmatpush1.msra.mxu0 0.0
          %2495 = vmatprep.subr.mxu0 0.0
          %2496 = vmatpush1.msra.mxu0 0.0
          %2497 = vmatprep.subr.mxu0 0.0
          %2498 = vmatpush1.msra.mxu0 0.0
          %2499 = vmatprep.subr.mxu0 0.0
          %2500 = vmatpush1.msra.mxu0 0.0
          %2501 = vmatprep.subr.mxu0 0.0
          %2502 = vmatpush1.msra.mxu0 0.0
          %2503 = vmatprep.subr.mxu0 0.0
          %2504 = vmatpush1.msra.mxu0 0.0
          %2505 = vmatprep.subr.mxu0 0.0
          %2506 = vmatpush1.msra.mxu0 0.0
          %2507 = vmatprep.subr.mxu0 0.0
          %2508 = vmatpush1.msra.mxu0 0.0
          %2509 = vmatprep.subr.mxu0 0.0
          %2510 = vmatpush1.msra.mxu0 0.0
          %2511 = vmatprep.subr.mxu0 0.0
          %2512 = vmatpush1.msra.mxu0 0.0
          %2513 = vmatprep.subr.mxu0 0.0
          %2514 = vmatpush1.msra.mxu0 0.0
          %2515 = vmatprep.subr.mxu0 0.0
          %2516 = vmatpush1.msra.mxu0 0.0
          %2517 = vmatprep.subr.mxu0 0.0
          %2518 = vmatpush1.msra.mxu0 0.0
          %2519 = vmatprep.subr.mxu0 0.0
          %2520 = vmatpush1.msra.mxu0 0.0
          %2521 = vmatprep.subr.mxu0 0.0
          %2522 = vmatpush1.msra.mxu0 0.0
          %2523 = vmatprep.subr.mxu0 0.0
          %2524 = vmatpush1.msra.mxu0 0.0
          %2525 = vmatprep.subr.mxu0 0.0
          %2526 = vmatpush1.msra.mxu0 0.0
          %2527 = vmatprep.subr.mxu0 0.0
          %2528 = vmatpush1.msra.mxu0 0.0
          %2529 = vmatprep.subr.mxu0 0.0
          %2530 = vmatpush1.msra.mxu0 0.0
          %2531 = vmatprep.mubr.f32.mxu0 0.0
          %2532 = vmatmul.mubr.f32.gmra.mrb[0].mxu0 %v2461
          %v2533 = vpop.f32.mrb[0].mxu0
          %v2534 = vadd.f32 %v2458, %v2533
          %v2535 = vpop.f32.mrb[0].mxu0
          %2536 = vdwg.mxu0
          %v2537 = vxor.u32 %v2534, 2147483648
          %v2538 = vmul.f32 %v2537, 1.442695
          %v2539 = vpow.pop %v2538
          %v2540 = vadd.f32 %v2539, 1.0
          %v2541 = vrcp.pop %v2540
          %v2542 = vmul.f32 1.0, %v2541
          %2543 = vst.msk [vmem:[%s376] sm:$0x1] %vm2356, %v2542
        $region64: #{tpu_custom_call.1} parent=55 // pred_fallthru
          _
        %s2544 = sand.u32 %s244, 1
        %s2545 = scalar_lea.sflag [#allocation4], %s2544
        %s2546 = sand.u32 %s244, 1
        %s2547 = smul.addr %s2546, 64
        %s2548 = scalar_lea.vmem [#allocation3], %s2547
        %s2549 = sand.u32 %s270, 1
        %s2550 = scalar_lea.sflag [#allocation6], %s2549
        %s2551 = sand.u32 %s270, 1
        %s2552 = scalar_lea.vmem [#allocation5], %s2551
        // Predicated region
        $region65: #{tpu_custom_call.1} parent=55 // pred_check
          %p2553 = pneg %p254
        $region66: #{tpu_custom_call.1} parent=55 // pred_check_branch
          %2555 = sbr.rel (%p2553) target = $region68
        $region67: #{tpu_custom_call.1} parent=55 // pred_region
          %s2556 = smul.u32 4, %s33
          %s2558 = ssub.s32 1024, 1024
          %2559 = vsyncadd %s2545, %s2558
          %s2560 = smul.addr %s2556, 2
          %s2561 = smul.addr %s32, 32
          %s2562 = sadd.s32 %s2560, %s2561
          %s2563 = smul.addr %s2562, 128
          %s2564 = scalar_lea.hbm %s9, %s2563
          %s2565 = sshll.u32 %s2548, 4
          %s2566 = int_to_ptr.vmem [resolvable:$true] %s2565
          %2571 = dma.vmem_to_hbm [thread:$0]  %s2566, 1024, %s2564, %s2545, 128, 128, 8
        $region68: #{tpu_custom_call.1} parent=55 // pred_fallthru
          _
        // Predicated region
        $region69: #{tpu_custom_call.1} parent=55 // pred_check
          %p2572 = pneg %p280
        $region70: #{tpu_custom_call.1} parent=55 // pred_check_branch
          %2574 = sbr.rel (%p2572) target = $region72
        $region71: #{tpu_custom_call.1} parent=55 // pred_region
          %s2576 = ssub.s32 16, 16
          %2577 = vsyncadd %s2550, %s2576
          %s2578 = smul.addr %s32, 16
          %s2579 = scalar_lea.hbm %s10, %s2578
          %s2581 = sshll.u32 %s2552, 4
          %s2582 = int_to_ptr.vmem [resolvable:$true] %s2581
          %2584 = dma.vmem_to_hbm [thread:$0]  %s2582, 16, %s2579, %s2550
        $region72: #{tpu_custom_call.1} parent=55 // pred_fallthru
          _
      $region56: #{tpu_custom_call.1} parent=5 // pred_fallthru
        _
      %p2585 = scmp.le.s32.totalorder 2, %s23
      // Predicated region
      $region73: #{tpu_custom_call.1} parent=5 // pred_check
        %p2586 = pneg %p2585
      $region74: #{tpu_custom_call.1} parent=5 // pred_check_branch
        %2588 = sbr.rel (%p2586) target = $region76
      $region75: #{tpu_custom_call.1} parent=5 // pred_region
        %s2589 = ssub.s32 %s23, 2
        // Predicated region
        $region77: #{tpu_custom_call.1} parent=75 // pred_check
          %p2590 = pneg %p260
        $region78: #{tpu_custom_call.1} parent=75 // pred_check_branch
          %2592 = sbr.rel (%p2590) target = $region80
        $region79: #{tpu_custom_call.1} parent=75 // pred_region
          %s2593 = sand.u32 %s245, 1
          %s2594 = scalar_lea.sflag [#allocation4], %s2593
          %s2595 = sand.u32 %s245, 1
          %s2596 = smul.addr %s2595, 64
          %s2597 = scalar_lea.vmem [#allocation3], %s2596
          %2598 = dma.done %s2594, 1024
        $region80: #{tpu_custom_call.1} parent=75 // pred_fallthru
          _
        // Predicated region
        $region81: #{tpu_custom_call.1} parent=75 // pred_check
          %p2599 = pneg %p286
        $region82: #{tpu_custom_call.1} parent=75 // pred_check_branch
          %2601 = sbr.rel (%p2599) target = $region84
        $region83: #{tpu_custom_call.1} parent=75 // pred_region
          %s2602 = sand.u32 %s271, 1
          %s2603 = scalar_lea.sflag [#allocation6], %s2602
          %s2604 = sand.u32 %s271, 1
          %s2605 = scalar_lea.vmem [#allocation5], %s2604
          %2606 = dma.done %s2603, 16
        $region84: #{tpu_custom_call.1} parent=75 // pred_fallthru
          _
      $region76: #{tpu_custom_call.1} parent=5 // pred_fallthru
        _
    $region6: #{tpu_custom_call.1} parent=1 // loop_footer
      %s27 = sadd.s32 1, %s23
    $region7: #{tpu_custom_call.1} parent=1 // loop_footer_branch
      %22 = sbr.rel target = $region3
    $region8: #{tpu_custom_call.1} parent=1 // loop_exit
      _
    %2607 = vsyncpa [#allocation4], 1
    %s2608 = scalar_lea.sflag [#allocation4], 1
    %2609 = vsyncpa %s2608, 1
    %2610 = vsyncpa [#allocation6], 1
    %s2611 = scalar_lea.sflag [#allocation6], 1
    %2612 = vsyncpa %s2611, 1

</llo_original>
